<compile_context>
chip_gen: v7x
topology: tpu7x:2x2x1
jax: 0.10.0
libtpu: 0.0.40
codegen_flags: <defaults>
</compile_context>

<pallas_src>
import jax
import jax.numpy as jnp
from jax.experimental import pallas as pl
from jax.experimental.pallas import tpu as pltpu

# ---------------- sizes (small, consistent with the PyTorch module) ----------------
B = 2           # batch
N = 128         # points per cloud
C_IN = 4        # input channels (Conv1d(4, ...))
ENC_H1 = 64     # first hidden width
ENC_H1P = 128   # lane-padded first hidden width
ENC_H2 = 128    # second hidden width
LATENT = 512    # latent_dim (module default)


# ---------------------------------- Pallas kernel -----------------------------------
def _make_kernel(n_batch, n_points, c_in):
    def kernel(pts_ref, w1_ref, b1_ref, w2_ref, b2_ref, w3_ref, b3_ref, out_ref):
        pts = pts_ref[...]                                   # (B*N, C_IN) f32

        # --- layer 1: per-point linear, K=C_IN is tiny -> VPU broadcast-FMAs ---
        h = pts[:, 0:1] * w1_ref[0:1, :]
        for c in range(1, c_in):
            h = h + pts[:, c:c + 1] * w1_ref[c:c + 1, :]
        h = jnp.maximum(h + b1_ref[...], 0.0)                # (B*N, ENC_H1P) f32

        # --- layer 2: MXU matmul, bf16 inputs, f32 accumulate ---
        h = jnp.dot(h.astype(jnp.bfloat16), w2_ref[...],
                    preferred_element_type=jnp.float32)
        h = jnp.maximum(h + b2_ref[...], 0.0)                # (B*N, ENC_H2) f32

        # --- layer 3: MXU matmul, bf16 inputs, f32 accumulate ---
        h = jnp.dot(h.astype(jnp.bfloat16), w3_ref[...],
                    preferred_element_type=jnp.float32)
        h = jnp.maximum(h + b3_ref[...], 0.0)                # (B*N, LATENT) f32

        # --- global max pool over the points of each batch element (static unroll) ---
        for b in range(n_batch):
            blk = h[b * n_points:(b + 1) * n_points, :]      # (N, LATENT)
            out_ref[b:b + 1, :] = jnp.max(blk, axis=0, keepdims=True)

    return kernel


# ------------------------------------- wrapper ---------------------------------------
def pointnet_encoder_forward(x, params):
    """x: (B, C_IN, N) f32 (PyTorch Conv1d layout) -> latent (B, LATENT) f32."""
    w1, b1, w2, b2, w3, b3 = params
    bsz, c_in, n_pts = x.shape

    # channels-last flat point slab: (B*N, C_IN)
    pts = jnp.transpose(x, (0, 2, 1)).reshape(bsz * n_pts, c_in).astype(jnp.float32)

    # lane-pad the 64-wide hidden dim to 128 (zeros -> ReLU(0)=0 -> contributes 0)
    pad1 = ENC_H1P - ENC_H1
    w1p = jnp.pad(w1, ((0, 0), (0, pad1)))                   # (C_IN, 128) f32
    b1p = jnp.pad(b1, ((0, 0), (0, pad1)))                   # (1, 128)    f32
    w2p = jnp.pad(w2, ((0, pad1), (0, 0)))                   # (128, 128)

    # pre-cast the MXU weights to bf16 once; biases stay f32 (VPU path)
    w2b = w2p.astype(jnp.bfloat16)
    w3b = w3.astype(jnp.bfloat16)
    b2f = b2.astype(jnp.float32)
    b3f = b3.astype(jnp.float32)

    m = bsz * n_pts
    flops = 2 * m * (c_in * ENC_H1 + ENC_H1 * ENC_H2 + ENC_H2 * LATENT)
    operands = (pts, w1p, b1p, w2b, b2f, w3b, b3f)
    bytes_accessed = sum(int(a.size) * a.dtype.itemsize for a in operands)
    bytes_accessed += bsz * LATENT * 4

    vmem_spec = pl.BlockSpec(memory_space=pltpu.MemorySpace.VMEM)

    out = pl.pallas_call(
        _make_kernel(bsz, n_pts, c_in),
        out_shape=jax.ShapeDtypeStruct((bsz, LATENT), jnp.float32),
        in_specs=[vmem_spec] * len(operands),
        out_specs=vmem_spec,
        cost_estimate=pl.CostEstimate(
            flops=flops, bytes_accessed=bytes_accessed, transcendentals=0),
    )(*operands)

    return out


# ------------------------------ pure-JAX reference ----------------------------------
def reference_forward(x, params):
    w1, b1, w2, b2, w3, b3 = params
    h = jnp.maximum(jnp.einsum("bcn,ch->bnh", x, w1) + b1, 0.0)
    h = jnp.maximum(jnp.einsum("bnh,hk->bnk", h, w2) + b2, 0.0)
    h = jnp.maximum(jnp.einsum("bnk,kl->bnl", h, w3) + b3, 0.0)
    return jnp.max(h, axis=1)                                 # (B, LATENT)


# ----------------------------------- parameters --------------------------------------
def init_params(key):
    ks = jax.random.split(key, 6)

    def lin(k, fan_in, shape):
        bound = 1.0 / jnp.sqrt(fan_in)
        return jax.random.uniform(k, shape, jnp.float32, -bound, bound)

    # Conv1d(cin, cout, 1) == per-point linear; weights stored (cin, cout), bias (1, cout)
    w1 = lin(ks[0], C_IN, (C_IN, ENC_H1));     b1 = lin(ks[1], C_IN, (1, ENC_H1))
    w2 = lin(ks[2], ENC_H1, (ENC_H1, ENC_H2)); b2 = lin(ks[3], ENC_H1, (1, ENC_H2))
    w3 = lin(ks[4], ENC_H2, (ENC_H2, LATENT)); b3 = lin(ks[5], ENC_H2, (1, LATENT))
    return (w1, b1, w2, b2, w3, b3)


if __name__ == "__main__":
    key = jax.random.PRNGKey(0)
    k_p, k_x = jax.random.split(key, 2)

    params = init_params(k_p)
    x = jax.random.normal(k_x, (B, C_IN, N), jnp.float32)     # PyTorch Conv1d layout

    out = pointnet_encoder_forward(x, params)
    out = jax.block_until_ready(out)

    ref = reference_forward(x, params)
    assert out.shape == (B, LATENT)
    # bf16 matmul inputs with f32 accumulation -> small, bounded deviation vs f32 ref
    assert jnp.allclose(out, ref, atol=2e-2, rtol=2e-2), "Pallas kernel mismatch vs reference"

    print("KERNEL_OK")
</pallas_src>

<mosaic_0001>
module attributes {stable_mosaic.version = 11 : i64} {
  func.func @kernel(%arg0: memref<256x4xf32, #tpu.memory_space<vmem>>, %arg1: memref<4x128xf32, #tpu.memory_space<vmem>>, %arg2: memref<1x128xf32, #tpu.memory_space<vmem>>, %arg3: memref<128x128xbf16, #tpu.memory_space<vmem>>, %arg4: memref<1x128xf32, #tpu.memory_space<vmem>>, %arg5: memref<128x512xbf16, #tpu.memory_space<vmem>>, %arg6: memref<1x512xf32, #tpu.memory_space<vmem>>, %arg7: memref<2x512xf32, #tpu.memory_space<vmem>>) attributes {dimension_semantics = [], scalar_prefetch = 0 : i64, scratch_operands = 0 : i64, tpu.core_type = #tpu.core_type<tc>} {
    %c0 = arith.constant 0 : index
    %c0_0 = arith.constant 0 : index
    %0 = vector.load %arg0[%c0, %c0_0] : memref<256x4xf32, #tpu.memory_space<vmem>>, vector<256x4xf32>
    %1 = vector.extract_strided_slice %0 {offsets = [0, 0], sizes = [256, 1], strides = [1, 1]} : vector<256x4xf32> to vector<256x1xf32>
    %c0_1 = arith.constant 0 : index
    %c0_2 = arith.constant 0 : index
    %2 = vector.load %arg1[%c0_1, %c0_2] : memref<4x128xf32, #tpu.memory_space<vmem>>, vector<1x128xf32>
    %3 = vector.broadcast %1 : vector<256x1xf32> to vector<256x128xf32>
    %4 = vector.broadcast %2 : vector<1x128xf32> to vector<256x128xf32>
    %5 = arith.mulf %3, %4 : vector<256x128xf32>
    %6 = vector.extract_strided_slice %0 {offsets = [0, 1], sizes = [256, 1], strides = [1, 1]} : vector<256x4xf32> to vector<256x1xf32>
    %c1 = arith.constant 1 : index
    %c0_3 = arith.constant 0 : index
    %7 = vector.load %arg1[%c1, %c0_3] : memref<4x128xf32, #tpu.memory_space<vmem>>, vector<1x128xf32>
    %8 = vector.broadcast %6 : vector<256x1xf32> to vector<256x128xf32>
    %9 = vector.broadcast %7 : vector<1x128xf32> to vector<256x128xf32>
    %10 = arith.mulf %8, %9 : vector<256x128xf32>
    %11 = arith.addf %5, %10 : vector<256x128xf32>
    %12 = vector.extract_strided_slice %0 {offsets = [0, 2], sizes = [256, 1], strides = [1, 1]} : vector<256x4xf32> to vector<256x1xf32>
    %c2 = arith.constant 2 : index
    %c0_4 = arith.constant 0 : index
    %13 = vector.load %arg1[%c2, %c0_4] : memref<4x128xf32, #tpu.memory_space<vmem>>, vector<1x128xf32>
    %14 = vector.broadcast %12 : vector<256x1xf32> to vector<256x128xf32>
    %15 = vector.broadcast %13 : vector<1x128xf32> to vector<256x128xf32>
    %16 = arith.mulf %14, %15 : vector<256x128xf32>
    %17 = arith.addf %11, %16 : vector<256x128xf32>
    %18 = vector.extract_strided_slice %0 {offsets = [0, 3], sizes = [256, 1], strides = [1, 1]} : vector<256x4xf32> to vector<256x1xf32>
    %c3 = arith.constant 3 : index
    %c0_5 = arith.constant 0 : index
    %19 = vector.load %arg1[%c3, %c0_5] : memref<4x128xf32, #tpu.memory_space<vmem>>, vector<1x128xf32>
    %20 = vector.broadcast %18 : vector<256x1xf32> to vector<256x128xf32>
    %21 = vector.broadcast %19 : vector<1x128xf32> to vector<256x128xf32>
    %22 = arith.mulf %20, %21 : vector<256x128xf32>
    %23 = arith.addf %17, %22 : vector<256x128xf32>
    %c0_6 = arith.constant 0 : index
    %c0_7 = arith.constant 0 : index
    %24 = vector.load %arg2[%c0_6, %c0_7] : memref<1x128xf32, #tpu.memory_space<vmem>>, vector<1x128xf32>
    %25 = vector.broadcast %24 : vector<1x128xf32> to vector<256x128xf32>
    %26 = arith.addf %23, %25 : vector<256x128xf32>
    %cst = arith.constant 0.000000e+00 : f32
    %27 = vector.broadcast %cst : f32 to vector<256x128xf32>
    %28 = arith.maximumf %26, %27 : vector<256x128xf32>
    %29 = arith.truncf %28 : vector<256x128xf32> to vector<256x128xbf16>
    %c0_8 = arith.constant 0 : index
    %c0_9 = arith.constant 0 : index
    %30 = vector.load %arg3[%c0_8, %c0_9] : memref<128x128xbf16, #tpu.memory_space<vmem>>, vector<128x128xbf16>
    %cst_10 = arith.constant dense<0.000000e+00> : vector<256x128xf32>
    %31 = tpu.matmul %29, %30, %cst_10 {dimension_numbers = #tpu.dot_dimension_numbers<[1], [0], [0], [1], [0, 0, 1, 1], [], []>} : vector<256x128xbf16>, vector<128x128xbf16>, vector<256x128xf32> -> vector<256x128xf32>
    %c0_11 = arith.constant 0 : index
    %c0_12 = arith.constant 0 : index
    %32 = vector.load %arg4[%c0_11, %c0_12] : memref<1x128xf32, #tpu.memory_space<vmem>>, vector<1x128xf32>
    %33 = vector.broadcast %32 : vector<1x128xf32> to vector<256x128xf32>
    %34 = arith.addf %31, %33 : vector<256x128xf32>
    %cst_13 = arith.constant 0.000000e+00 : f32
    %35 = vector.broadcast %cst_13 : f32 to vector<256x128xf32>
    %36 = arith.maximumf %34, %35 : vector<256x128xf32>
    %37 = arith.truncf %36 : vector<256x128xf32> to vector<256x128xbf16>
    %c0_14 = arith.constant 0 : index
    %c0_15 = arith.constant 0 : index
    %38 = vector.load %arg5[%c0_14, %c0_15] : memref<128x512xbf16, #tpu.memory_space<vmem>>, vector<128x512xbf16>
    %cst_16 = arith.constant dense<0.000000e+00> : vector<256x512xf32>
    %39 = tpu.matmul %37, %38, %cst_16 {dimension_numbers = #tpu.dot_dimension_numbers<[1], [0], [0], [1], [0, 0, 1, 1], [], []>} : vector<256x128xbf16>, vector<128x512xbf16>, vector<256x512xf32> -> vector<256x512xf32>
    %c0_17 = arith.constant 0 : index
    %c0_18 = arith.constant 0 : index
    %40 = vector.load %arg6[%c0_17, %c0_18] : memref<1x512xf32, #tpu.memory_space<vmem>>, vector<1x512xf32>
    %41 = vector.broadcast %40 : vector<1x512xf32> to vector<256x512xf32>
    %42 = arith.addf %39, %41 : vector<256x512xf32>
    %cst_19 = arith.constant 0.000000e+00 : f32
    %43 = vector.broadcast %cst_19 : f32 to vector<256x512xf32>
    %44 = arith.maximumf %42, %43 : vector<256x512xf32>
    %45 = vector.extract_strided_slice %44 {offsets = [0, 0], sizes = [128, 512], strides = [1, 1]} : vector<256x512xf32> to vector<128x512xf32>
    %cst_20 = arith.constant dense<0xFF800000> : vector<512xf32>
    %46 = vector.multi_reduction <maximumf>, %45, %cst_20 [0] : vector<128x512xf32> to vector<512xf32>
    %47 = vector.shape_cast %46 : vector<512xf32> to vector<1x512xf32>
    %c0_21 = arith.constant 0 : index
    %c0_22 = arith.constant 0 : index
    %48 = vector.load %arg7[%c0_21, %c0_22] : memref<2x512xf32, #tpu.memory_space<vmem>>, vector<1x512xf32>
    tpu.vector_store %arg7[%c0_21, %c0_22], %47 {strides = array<i32>} : memref<2x512xf32, #tpu.memory_space<vmem>>, vector<1x512xf32>,
    %49 = vector.extract_strided_slice %44 {offsets = [128, 0], sizes = [128, 512], strides = [1, 1]} : vector<256x512xf32> to vector<128x512xf32>
    %cst_23 = arith.constant dense<0xFF800000> : vector<512xf32>
    %50 = vector.multi_reduction <maximumf>, %49, %cst_23 [0] : vector<128x512xf32> to vector<512xf32>
    %51 = vector.shape_cast %50 : vector<512xf32> to vector<1x512xf32>
    %c1_24 = arith.constant 1 : index
    %c0_25 = arith.constant 0 : index
    %52 = vector.load %arg7[%c1_24, %c0_25] : memref<2x512xf32, #tpu.memory_space<vmem>>, vector<1x512xf32>
    tpu.vector_store %arg7[%c1_24, %c0_25], %51 {strides = array<i32>} : memref<2x512xf32, #tpu.memory_space<vmem>>, vector<1x512xf32>,
    return
  }
}

</mosaic_0001>

<llo_original>
// kernel: tpu_custom_call.1
$region0: #{tpu_custom_call.1}
  #allocation0 [shape = 'u32[]', space=smem, size = 0x4, offset = 0x4, fixed_abs, tag = 'smem constant byte address 0x4 - core index']
  #allocation1 [shape = 'u32[144,128]{1,0:T(1,128)}', space=vmem, size = 0x12000, scoped, tag = 'internal scratch']
  %s0 = inlined_call_operand.vmem [shape: f32[256,4], index: 0, kind: input, shape index: {}]
  %s1 = inlined_call_operand.vmem [shape: f32[4,128], index: 1, kind: input, shape index: {}]
  %s2 = inlined_call_operand.vmem [shape: f32[1,128], index: 2, kind: input, shape index: {}]
  %s3 = inlined_call_operand.hbm [shape: bf16[128,128], index: 3, kind: input, shape index: {}]
  %s4 = inlined_call_operand.vmem [shape: f32[1,128], index: 4, kind: input, shape index: {}]
  %s5 = inlined_call_operand.vmem [shape: bf16[128,512], index: 5, kind: input, shape index: {}]
  %s6 = inlined_call_operand.vmem [shape: f32[1,512], index: 6, kind: input, shape index: {}]
  %s7 = inlined_call_operand.hbm [shape: f32[2,512], index: 7, kind: output, shape index: {}]
  %s8 = sld [smem:[#allocation0]]
  $region42: #{tpu_custom_call.1} parent=0
    _
  %s10 = ssub.s32 1, %s8
  %s11 = scalar_select 0, %s10, %s8
  $region1: #{tpu_custom_call.1} parent=0
    #allocation2 [shape = 'u8[32768]{0}', space=vmem, size = 0x8000, scoped, tag = 'input window, operand 3, single buffered']
    #allocation3 [shape = 's32[1]{0}', space=sflag, size = 0x4, scoped, tag = 'scoped memory for tpu_custom_call.1']
    #allocation4 [shape = 's32[1]{0}', space=sflag, size = 0x4, scoped, tag = 'scoped memory for tpu_custom_call.1']
    #allocation5 [shape = 'u8[4096]{0}', space=vmem, size = 0x1000, scoped, tag = 'output window, operand 0, single buffered']
    %12 = vsyncpa [#allocation3], 0
    %13 = vsyncpa [#allocation4], 0
    // Predicated region
    $region2: #{tpu_custom_call.1} parent=1 // pred_check
      _
    $region3: #{tpu_custom_call.1} parent=1 // pred_check_branch
      %15 = sbr.rel (0) target = $region5
    $region4: #{tpu_custom_call.1} parent=1 // pred_region
      _
    $region5: #{tpu_custom_call.1} parent=1 // pred_fallthru
      _
    // Predicated region
    $region6: #{tpu_custom_call.1} parent=1 // pred_check
      _
    $region7: #{tpu_custom_call.1} parent=1 // pred_check_branch
      %17 = sbr.rel (0) target = $region9
    $region8: #{tpu_custom_call.1} parent=1 // pred_region
      _
    $region9: #{tpu_custom_call.1} parent=1 // pred_fallthru
      _
    // Predicated region
    $region10: #{tpu_custom_call.1} parent=1 // pred_check
      _
    $region11: #{tpu_custom_call.1} parent=1 // pred_check_branch
      %19 = sbr.rel (0) target = $region13
    $region12: #{tpu_custom_call.1} parent=1 // pred_region
      _
    $region13: #{tpu_custom_call.1} parent=1 // pred_fallthru
      _
    // Predicated region
    $region14: #{tpu_custom_call.1} parent=1 // pred_check
      _
    $region15: #{tpu_custom_call.1} parent=1 // pred_check_branch
      %21 = sbr.rel (0) target = $region17
    $region16: #{tpu_custom_call.1} parent=1 // pred_region
      %s23 = ssub.s32 1024, 1024
      %24 = vsyncadd [#allocation3], %s23
      %s25 = sshll.u32 [#allocation2], 4
      %s26 = int_to_ptr.vmem [resolvable:$true] %s25
      %31 = dma.hbm_to_vmem [thread:$0]  %s3, 1024, %s26, [#allocation3], 64, 64, 4
    $region17: #{tpu_custom_call.1} parent=1 // pred_fallthru
      _
    // Predicated region
    $region18: #{tpu_custom_call.1} parent=1 // pred_check
      _
    $region19: #{tpu_custom_call.1} parent=1 // pred_check_branch
      %33 = sbr.rel (0) target = $region21
    $region20: #{tpu_custom_call.1} parent=1 // pred_region
      _
    $region21: #{tpu_custom_call.1} parent=1 // pred_fallthru
      _
    // Predicated region
    $region22: #{tpu_custom_call.1} parent=1 // pred_check
      _
    $region23: #{tpu_custom_call.1} parent=1 // pred_check_branch
      %35 = sbr.rel (0) target = $region25
    $region24: #{tpu_custom_call.1} parent=1 // pred_region
      _
    $region25: #{tpu_custom_call.1} parent=1 // pred_fallthru
      _
    // Predicated region
    $region26: #{tpu_custom_call.1} parent=1 // pred_check
      _
    $region27: #{tpu_custom_call.1} parent=1 // pred_check_branch
      %37 = sbr.rel (0) target = $region29
    $region28: #{tpu_custom_call.1} parent=1 // pred_region
      _
    $region29: #{tpu_custom_call.1} parent=1 // pred_fallthru
      _
    // Predicated region
    $region30: #{tpu_custom_call.1} parent=1 // pred_check
      _
    $region31: #{tpu_custom_call.1} parent=1 // pred_check_branch
      %39 = sbr.rel (0) target = $region33
    $region32: #{tpu_custom_call.1} parent=1 // pred_region
      %40 = dma.done [#allocation3], 1024
    $region33: #{tpu_custom_call.1} parent=1 // pred_fallthru
      _
    %v42 = vld [vmem:[%s0] sm:$0xff]
    %v43 = vld [vmem:[%s0 + $0x8] sm:$0xff]
    %v44 = vld [vmem:[%s0 + $0x10] sm:$0xff]
    %v45 = vld [vmem:[%s0 + $0x18] sm:$0xff]
    %v46 = vld [vmem:[%s0 + $0x20] sm:$0xff]
    %v47 = vld [vmem:[%s0 + $0x28] sm:$0xff]
    %v48 = vld [vmem:[%s0 + $0x30] sm:$0xff]
    %v49 = vld [vmem:[%s0 + $0x38] sm:$0xff]
    %v50 = vld [vmem:[%s0 + $0x40] sm:$0xff]
    %v51 = vld [vmem:[%s0 + $0x48] sm:$0xff]
    %v52 = vld [vmem:[%s0 + $0x50] sm:$0xff]
    %v53 = vld [vmem:[%s0 + $0x58] sm:$0xff]
    %v54 = vld [vmem:[%s0 + $0x60] sm:$0xff]
    %v55 = vld [vmem:[%s0 + $0x68] sm:$0xff]
    %v56 = vld [vmem:[%s0 + $0x70] sm:$0xff]
    %v57 = vld [vmem:[%s0 + $0x78] sm:$0xff]
    %v58 = vld [vmem:[%s0 + $0x80] sm:$0xff]
    %v59 = vld [vmem:[%s0 + $0x88] sm:$0xff]
    %v60 = vld [vmem:[%s0 + $0x90] sm:$0xff]
    %v61 = vld [vmem:[%s0 + $0x98] sm:$0xff]
    %v62 = vld [vmem:[%s0 + $0xa0] sm:$0xff]
    %v63 = vld [vmem:[%s0 + $0xa8] sm:$0xff]
    %v64 = vld [vmem:[%s0 + $0xb0] sm:$0xff]
    %v65 = vld [vmem:[%s0 + $0xb8] sm:$0xff]
    %v66 = vld [vmem:[%s0 + $0xc0] sm:$0xff]
    %v67 = vld [vmem:[%s0 + $0xc8] sm:$0xff]
    %v68 = vld [vmem:[%s0 + $0xd0] sm:$0xff]
    %v69 = vld [vmem:[%s0 + $0xd8] sm:$0xff]
    %v70 = vld [vmem:[%s0 + $0xe0] sm:$0xff]
    %v71 = vld [vmem:[%s0 + $0xe8] sm:$0xff]
    %v72 = vld [vmem:[%s0 + $0xf0] sm:$0xff]
    %v73 = vld [vmem:[%s0 + $0xf8] sm:$0xff]
    %v74 = vld [vmem:[%s1] sm:$0x1]
    %76 = vset.pattern.permute.xlu0 0
    %77 = vperm.xlu0 %76, %v42
    %v78 = vpop.permute.xlu0 %77
    %81 = vset.pattern.permute.xlu0 0
    %82 = vperm.xlu0 %81, %v43
    %v83 = vpop.permute.xlu0 %82
    %86 = vset.pattern.permute.xlu0 0
    %87 = vperm.xlu0 %86, %v44
    %v88 = vpop.permute.xlu0 %87
    %91 = vset.pattern.permute.xlu0 0
    %92 = vperm.xlu0 %91, %v45
    %v93 = vpop.permute.xlu0 %92
    %96 = vset.pattern.permute.xlu0 0
    %97 = vperm.xlu0 %96, %v46
    %v98 = vpop.permute.xlu0 %97
    %101 = vset.pattern.permute.xlu0 0
    %102 = vperm.xlu0 %101, %v47
    %v103 = vpop.permute.xlu0 %102
    %106 = vset.pattern.permute.xlu0 0
    %107 = vperm.xlu0 %106, %v48
    %v108 = vpop.permute.xlu0 %107
    %111 = vset.pattern.permute.xlu0 0
    %112 = vperm.xlu0 %111, %v49
    %v113 = vpop.permute.xlu0 %112
    %116 = vset.pattern.permute.xlu0 0
    %117 = vperm.xlu0 %116, %v50
    %v118 = vpop.permute.xlu0 %117
    %121 = vset.pattern.permute.xlu0 0
    %122 = vperm.xlu0 %121, %v51
    %v123 = vpop.permute.xlu0 %122
    %126 = vset.pattern.permute.xlu0 0
    %127 = vperm.xlu0 %126, %v52
    %v128 = vpop.permute.xlu0 %127
    %131 = vset.pattern.permute.xlu0 0
    %132 = vperm.xlu0 %131, %v53
    %v133 = vpop.permute.xlu0 %132
    %136 = vset.pattern.permute.xlu0 0
    %137 = vperm.xlu0 %136, %v54
    %v138 = vpop.permute.xlu0 %137
    %141 = vset.pattern.permute.xlu0 0
    %142 = vperm.xlu0 %141, %v55
    %v143 = vpop.permute.xlu0 %142
    %146 = vset.pattern.permute.xlu0 0
    %147 = vperm.xlu0 %146, %v56
    %v148 = vpop.permute.xlu0 %147
    %151 = vset.pattern.permute.xlu0 0
    %152 = vperm.xlu0 %151, %v57
    %v153 = vpop.permute.xlu0 %152
    %156 = vset.pattern.permute.xlu0 0
    %157 = vperm.xlu0 %156, %v58
    %v158 = vpop.permute.xlu0 %157
    %161 = vset.pattern.permute.xlu0 0
    %162 = vperm.xlu0 %161, %v59
    %v163 = vpop.permute.xlu0 %162
    %166 = vset.pattern.permute.xlu0 0
    %167 = vperm.xlu0 %166, %v60
    %v168 = vpop.permute.xlu0 %167
    %171 = vset.pattern.permute.xlu0 0
    %172 = vperm.xlu0 %171, %v61
    %v173 = vpop.permute.xlu0 %172
    %176 = vset.pattern.permute.xlu0 0
    %177 = vperm.xlu0 %176, %v62
    %v178 = vpop.permute.xlu0 %177
    %181 = vset.pattern.permute.xlu0 0
    %182 = vperm.xlu0 %181, %v63
    %v183 = vpop.permute.xlu0 %182
    %186 = vset.pattern.permute.xlu0 0
    %187 = vperm.xlu0 %186, %v64
    %v188 = vpop.permute.xlu0 %187
    %191 = vset.pattern.permute.xlu0 0
    %192 = vperm.xlu0 %191, %v65
    %v193 = vpop.permute.xlu0 %192
    %196 = vset.pattern.permute.xlu0 0
    %197 = vperm.xlu0 %196, %v66
    %v198 = vpop.permute.xlu0 %197
    %201 = vset.pattern.permute.xlu0 0
    %202 = vperm.xlu0 %201, %v67
    %v203 = vpop.permute.xlu0 %202
    %206 = vset.pattern.permute.xlu0 0
    %207 = vperm.xlu0 %206, %v68
    %v208 = vpop.permute.xlu0 %207
    %211 = vset.pattern.permute.xlu0 0
    %212 = vperm.xlu0 %211, %v69
    %v213 = vpop.permute.xlu0 %212
    %216 = vset.pattern.permute.xlu0 0
    %217 = vperm.xlu0 %216, %v70
    %v218 = vpop.permute.xlu0 %217
    %221 = vset.pattern.permute.xlu0 0
    %222 = vperm.xlu0 %221, %v71
    %v223 = vpop.permute.xlu0 %222
    %226 = vset.pattern.permute.xlu0 0
    %227 = vperm.xlu0 %226, %v72
    %v228 = vpop.permute.xlu0 %227
    %231 = vset.pattern.permute.xlu0 0
    %232 = vperm.xlu0 %231, %v73
    %v233 = vpop.permute.xlu0 %232
    %v235 = vlaneseq
    %v236 = vshrl.u32 %v235, 7
    %v237 = vsub.s32 0, %v236
    %v238 = vrot.slane %v74, %v237
    %v239 = vmul.f32 %v78, %v238
    %v240 = vmul.f32 %v83, %v238
    %v241 = vmul.f32 %v88, %v238
    %v242 = vmul.f32 %v93, %v238
    %v243 = vmul.f32 %v98, %v238
    %v244 = vmul.f32 %v103, %v238
    %v245 = vmul.f32 %v108, %v238
    %v246 = vmul.f32 %v113, %v238
    %v247 = vmul.f32 %v118, %v238
    %v248 = vmul.f32 %v123, %v238
    %v249 = vmul.f32 %v128, %v238
    %v250 = vmul.f32 %v133, %v238
    %v251 = vmul.f32 %v138, %v238
    %v252 = vmul.f32 %v143, %v238
    %v253 = vmul.f32 %v148, %v238
    %v254 = vmul.f32 %v153, %v238
    %v255 = vmul.f32 %v158, %v238
    %v256 = vmul.f32 %v163, %v238
    %v257 = vmul.f32 %v168, %v238
    %v258 = vmul.f32 %v173, %v238
    %v259 = vmul.f32 %v178, %v238
    %v260 = vmul.f32 %v183, %v238
    %v261 = vmul.f32 %v188, %v238
    %v262 = vmul.f32 %v193, %v238
    %v263 = vmul.f32 %v198, %v238
    %v264 = vmul.f32 %v203, %v238
    %v265 = vmul.f32 %v208, %v238
    %v266 = vmul.f32 %v213, %v238
    %v267 = vmul.f32 %v218, %v238
    %v268 = vmul.f32 %v223, %v238
    %v269 = vmul.f32 %v228, %v238
    %v270 = vmul.f32 %v233, %v238
    %v271 = vld [vmem:[%s1 + $0x1] sm:$0x1]
    %272 = vset.pattern.permute.xlu0 1
    %273 = vperm.xlu0 %272, %v42
    %v274 = vpop.permute.xlu0 %273
    %276 = vset.pattern.permute.xlu0 1
    %277 = vperm.xlu0 %276, %v43
    %v278 = vpop.permute.xlu0 %277
    %280 = vset.pattern.permute.xlu0 1
    %281 = vperm.xlu0 %280, %v44
    %v282 = vpop.permute.xlu0 %281
    %284 = vset.pattern.permute.xlu0 1
    %285 = vperm.xlu0 %284, %v45
    %v286 = vpop.permute.xlu0 %285
    %288 = vset.pattern.permute.xlu0 1
    %289 = vperm.xlu0 %288, %v46
    %v290 = vpop.permute.xlu0 %289
    %292 = vset.pattern.permute.xlu0 1
    %293 = vperm.xlu0 %292, %v47
    %v294 = vpop.permute.xlu0 %293
    %296 = vset.pattern.permute.xlu0 1
    %297 = vperm.xlu0 %296, %v48
    %v298 = vpop.permute.xlu0 %297
    %300 = vset.pattern.permute.xlu0 1
    %301 = vperm.xlu0 %300, %v49
    %v302 = vpop.permute.xlu0 %301
    %304 = vset.pattern.permute.xlu0 1
    %305 = vperm.xlu0 %304, %v50
    %v306 = vpop.permute.xlu0 %305
    %308 = vset.pattern.permute.xlu0 1
    %309 = vperm.xlu0 %308, %v51
    %v310 = vpop.permute.xlu0 %309
    %312 = vset.pattern.permute.xlu0 1
    %313 = vperm.xlu0 %312, %v52
    %v314 = vpop.permute.xlu0 %313
    %316 = vset.pattern.permute.xlu0 1
    %317 = vperm.xlu0 %316, %v53
    %v318 = vpop.permute.xlu0 %317
    %320 = vset.pattern.permute.xlu0 1
    %321 = vperm.xlu0 %320, %v54
    %v322 = vpop.permute.xlu0 %321
    %324 = vset.pattern.permute.xlu0 1
    %325 = vperm.xlu0 %324, %v55
    %v326 = vpop.permute.xlu0 %325
    %328 = vset.pattern.permute.xlu0 1
    %329 = vperm.xlu0 %328, %v56
    %v330 = vpop.permute.xlu0 %329
    %332 = vset.pattern.permute.xlu0 1
    %333 = vperm.xlu0 %332, %v57
    %v334 = vpop.permute.xlu0 %333
    %336 = vset.pattern.permute.xlu0 1
    %337 = vperm.xlu0 %336, %v58
    %v338 = vpop.permute.xlu0 %337
    %340 = vset.pattern.permute.xlu0 1
    %341 = vperm.xlu0 %340, %v59
    %v342 = vpop.permute.xlu0 %341
    %344 = vset.pattern.permute.xlu0 1
    %345 = vperm.xlu0 %344, %v60
    %v346 = vpop.permute.xlu0 %345
    %348 = vset.pattern.permute.xlu0 1
    %349 = vperm.xlu0 %348, %v61
    %v350 = vpop.permute.xlu0 %349
    %352 = vset.pattern.permute.xlu0 1
    %353 = vperm.xlu0 %352, %v62
    %v354 = vpop.permute.xlu0 %353
    %356 = vset.pattern.permute.xlu0 1
    %357 = vperm.xlu0 %356, %v63
    %v358 = vpop.permute.xlu0 %357
    %360 = vset.pattern.permute.xlu0 1
    %361 = vperm.xlu0 %360, %v64
    %v362 = vpop.permute.xlu0 %361
    %364 = vset.pattern.permute.xlu0 1
    %365 = vperm.xlu0 %364, %v65
    %v366 = vpop.permute.xlu0 %365
    %368 = vset.pattern.permute.xlu0 1
    %369 = vperm.xlu0 %368, %v66
    %v370 = vpop.permute.xlu0 %369
    %372 = vset.pattern.permute.xlu0 1
    %373 = vperm.xlu0 %372, %v67
    %v374 = vpop.permute.xlu0 %373
    %376 = vset.pattern.permute.xlu0 1
    %377 = vperm.xlu0 %376, %v68
    %v378 = vpop.permute.xlu0 %377
    %380 = vset.pattern.permute.xlu0 1
    %381 = vperm.xlu0 %380, %v69
    %v382 = vpop.permute.xlu0 %381
    %384 = vset.pattern.permute.xlu0 1
    %385 = vperm.xlu0 %384, %v70
    %v386 = vpop.permute.xlu0 %385
    %388 = vset.pattern.permute.xlu0 1
    %389 = vperm.xlu0 %388, %v71
    %v390 = vpop.permute.xlu0 %389
    %392 = vset.pattern.permute.xlu0 1
    %393 = vperm.xlu0 %392, %v72
    %v394 = vpop.permute.xlu0 %393
    %396 = vset.pattern.permute.xlu0 1
    %397 = vperm.xlu0 %396, %v73
    %v398 = vpop.permute.xlu0 %397
    %v400 = vlaneseq
    %v401 = vshrl.u32 %v400, 7
    %v402 = vsub.s32 0, %v401
    %v403 = vrot.slane %v271, %v402
    %v404 = vmul.f32 %v274, %v403
    %v405 = vmul.f32 %v278, %v403
    %v406 = vmul.f32 %v282, %v403
    %v407 = vmul.f32 %v286, %v403
    %v408 = vmul.f32 %v290, %v403
    %v409 = vmul.f32 %v294, %v403
    %v410 = vmul.f32 %v298, %v403
    %v411 = vmul.f32 %v302, %v403
    %v412 = vmul.f32 %v306, %v403
    %v413 = vmul.f32 %v310, %v403
    %v414 = vmul.f32 %v314, %v403
    %v415 = vmul.f32 %v318, %v403
    %v416 = vmul.f32 %v322, %v403
    %v417 = vmul.f32 %v326, %v403
    %v418 = vmul.f32 %v330, %v403
    %v419 = vmul.f32 %v334, %v403
    %v420 = vmul.f32 %v338, %v403
    %v421 = vmul.f32 %v342, %v403
    %v422 = vmul.f32 %v346, %v403
    %v423 = vmul.f32 %v350, %v403
    %v424 = vmul.f32 %v354, %v403
    %v425 = vmul.f32 %v358, %v403
    %v426 = vmul.f32 %v362, %v403
    %v427 = vmul.f32 %v366, %v403
    %v428 = vmul.f32 %v370, %v403
    %v429 = vmul.f32 %v374, %v403
    %v430 = vmul.f32 %v378, %v403
    %v431 = vmul.f32 %v382, %v403
    %v432 = vmul.f32 %v386, %v403
    %v433 = vmul.f32 %v390, %v403
    %v434 = vmul.f32 %v394, %v403
    %v435 = vmul.f32 %v398, %v403
    %v436 = vadd.f32 %v239, %v404
    %v437 = vadd.f32 %v240, %v405
    %v438 = vadd.f32 %v241, %v406
    %v439 = vadd.f32 %v242, %v407
    %v440 = vadd.f32 %v243, %v408
    %v441 = vadd.f32 %v244, %v409
    %v442 = vadd.f32 %v245, %v410
    %v443 = vadd.f32 %v246, %v411
    %v444 = vadd.f32 %v247, %v412
    %v445 = vadd.f32 %v248, %v413
    %v446 = vadd.f32 %v249, %v414
    %v447 = vadd.f32 %v250, %v415
    %v448 = vadd.f32 %v251, %v416
    %v449 = vadd.f32 %v252, %v417
    %v450 = vadd.f32 %v253, %v418
    %v451 = vadd.f32 %v254, %v419
    %v452 = vadd.f32 %v255, %v420
    %v453 = vadd.f32 %v256, %v421
    %v454 = vadd.f32 %v257, %v422
    %v455 = vadd.f32 %v258, %v423
    %v456 = vadd.f32 %v259, %v424
    %v457 = vadd.f32 %v260, %v425
    %v458 = vadd.f32 %v261, %v426
    %v459 = vadd.f32 %v262, %v427
    %v460 = vadd.f32 %v263, %v428
    %v461 = vadd.f32 %v264, %v429
    %v462 = vadd.f32 %v265, %v430
    %v463 = vadd.f32 %v266, %v431
    %v464 = vadd.f32 %v267, %v432
    %v465 = vadd.f32 %v268, %v433
    %v466 = vadd.f32 %v269, %v434
    %v467 = vadd.f32 %v270, %v435
    %v468 = vld [vmem:[%s1 + $0x2] sm:$0x1]
    %469 = vset.pattern.permute.xlu0 2
    %470 = vperm.xlu0 %469, %v42
    %v471 = vpop.permute.xlu0 %470
    %473 = vset.pattern.permute.xlu0 2
    %474 = vperm.xlu0 %473, %v43
    %v475 = vpop.permute.xlu0 %474
    %477 = vset.pattern.permute.xlu0 2
    %478 = vperm.xlu0 %477, %v44
    %v479 = vpop.permute.xlu0 %478
    %481 = vset.pattern.permute.xlu0 2
    %482 = vperm.xlu0 %481, %v45
    %v483 = vpop.permute.xlu0 %482
    %485 = vset.pattern.permute.xlu0 2
    %486 = vperm.xlu0 %485, %v46
    %v487 = vpop.permute.xlu0 %486
    %489 = vset.pattern.permute.xlu0 2
    %490 = vperm.xlu0 %489, %v47
    %v491 = vpop.permute.xlu0 %490
    %493 = vset.pattern.permute.xlu0 2
    %494 = vperm.xlu0 %493, %v48
    %v495 = vpop.permute.xlu0 %494
    %497 = vset.pattern.permute.xlu0 2
    %498 = vperm.xlu0 %497, %v49
    %v499 = vpop.permute.xlu0 %498
    %501 = vset.pattern.permute.xlu0 2
    %502 = vperm.xlu0 %501, %v50
    %v503 = vpop.permute.xlu0 %502
    %505 = vset.pattern.permute.xlu0 2
    %506 = vperm.xlu0 %505, %v51
    %v507 = vpop.permute.xlu0 %506
    %509 = vset.pattern.permute.xlu0 2
    %510 = vperm.xlu0 %509, %v52
    %v511 = vpop.permute.xlu0 %510
    %513 = vset.pattern.permute.xlu0 2
    %514 = vperm.xlu0 %513, %v53
    %v515 = vpop.permute.xlu0 %514
    %517 = vset.pattern.permute.xlu0 2
    %518 = vperm.xlu0 %517, %v54
    %v519 = vpop.permute.xlu0 %518
    %521 = vset.pattern.permute.xlu0 2
    %522 = vperm.xlu0 %521, %v55
    %v523 = vpop.permute.xlu0 %522
    %525 = vset.pattern.permute.xlu0 2
    %526 = vperm.xlu0 %525, %v56
    %v527 = vpop.permute.xlu0 %526
    %529 = vset.pattern.permute.xlu0 2
    %530 = vperm.xlu0 %529, %v57
    %v531 = vpop.permute.xlu0 %530
    %533 = vset.pattern.permute.xlu0 2
    %534 = vperm.xlu0 %533, %v58
    %v535 = vpop.permute.xlu0 %534
    %537 = vset.pattern.permute.xlu0 2
    %538 = vperm.xlu0 %537, %v59
    %v539 = vpop.permute.xlu0 %538
    %541 = vset.pattern.permute.xlu0 2
    %542 = vperm.xlu0 %541, %v60
    %v543 = vpop.permute.xlu0 %542
    %545 = vset.pattern.permute.xlu0 2
    %546 = vperm.xlu0 %545, %v61
    %v547 = vpop.permute.xlu0 %546
    %549 = vset.pattern.permute.xlu0 2
    %550 = vperm.xlu0 %549, %v62
    %v551 = vpop.permute.xlu0 %550
    %553 = vset.pattern.permute.xlu0 2
    %554 = vperm.xlu0 %553, %v63
    %v555 = vpop.permute.xlu0 %554
    %557 = vset.pattern.permute.xlu0 2
    %558 = vperm.xlu0 %557, %v64
    %v559 = vpop.permute.xlu0 %558
    %561 = vset.pattern.permute.xlu0 2
    %562 = vperm.xlu0 %561, %v65
    %v563 = vpop.permute.xlu0 %562
    %565 = vset.pattern.permute.xlu0 2
    %566 = vperm.xlu0 %565, %v66
    %v567 = vpop.permute.xlu0 %566
    %569 = vset.pattern.permute.xlu0 2
    %570 = vperm.xlu0 %569, %v67
    %v571 = vpop.permute.xlu0 %570
    %573 = vset.pattern.permute.xlu0 2
    %574 = vperm.xlu0 %573, %v68
    %v575 = vpop.permute.xlu0 %574
    %577 = vset.pattern.permute.xlu0 2
    %578 = vperm.xlu0 %577, %v69
    %v579 = vpop.permute.xlu0 %578
    %581 = vset.pattern.permute.xlu0 2
    %582 = vperm.xlu0 %581, %v70
    %v583 = vpop.permute.xlu0 %582
    %585 = vset.pattern.permute.xlu0 2
    %586 = vperm.xlu0 %585, %v71
    %v587 = vpop.permute.xlu0 %586
    %589 = vset.pattern.permute.xlu0 2
    %590 = vperm.xlu0 %589, %v72
    %v591 = vpop.permute.xlu0 %590
    %593 = vset.pattern.permute.xlu0 2
    %594 = vperm.xlu0 %593, %v73
    %v595 = vpop.permute.xlu0 %594
    %v597 = vlaneseq
    %v598 = vshrl.u32 %v597, 7
    %v599 = vsub.s32 0, %v598
    %v600 = vrot.slane %v468, %v599
    %v601 = vmul.f32 %v471, %v600
    %v602 = vmul.f32 %v475, %v600
    %v603 = vmul.f32 %v479, %v600
    %v604 = vmul.f32 %v483, %v600
    %v605 = vmul.f32 %v487, %v600
    %v606 = vmul.f32 %v491, %v600
    %v607 = vmul.f32 %v495, %v600
    %v608 = vmul.f32 %v499, %v600
    %v609 = vmul.f32 %v503, %v600
    %v610 = vmul.f32 %v507, %v600
    %v611 = vmul.f32 %v511, %v600
    %v612 = vmul.f32 %v515, %v600
    %v613 = vmul.f32 %v519, %v600
    %v614 = vmul.f32 %v523, %v600
    %v615 = vmul.f32 %v527, %v600
    %v616 = vmul.f32 %v531, %v600
    %v617 = vmul.f32 %v535, %v600
    %v618 = vmul.f32 %v539, %v600
    %v619 = vmul.f32 %v543, %v600
    %v620 = vmul.f32 %v547, %v600
    %v621 = vmul.f32 %v551, %v600
    %v622 = vmul.f32 %v555, %v600
    %v623 = vmul.f32 %v559, %v600
    %v624 = vmul.f32 %v563, %v600
    %v625 = vmul.f32 %v567, %v600
    %v626 = vmul.f32 %v571, %v600
    %v627 = vmul.f32 %v575, %v600
    %v628 = vmul.f32 %v579, %v600
    %v629 = vmul.f32 %v583, %v600
    %v630 = vmul.f32 %v587, %v600
    %v631 = vmul.f32 %v591, %v600
    %v632 = vmul.f32 %v595, %v600
    %v633 = vadd.f32 %v436, %v601
    %v634 = vadd.f32 %v437, %v602
    %v635 = vadd.f32 %v438, %v603
    %v636 = vadd.f32 %v439, %v604
    %v637 = vadd.f32 %v440, %v605
    %v638 = vadd.f32 %v441, %v606
    %v639 = vadd.f32 %v442, %v607
    %v640 = vadd.f32 %v443, %v608
    %v641 = vadd.f32 %v444, %v609
    %v642 = vadd.f32 %v445, %v610
    %v643 = vadd.f32 %v446, %v611
    %v644 = vadd.f32 %v447, %v612
    %v645 = vadd.f32 %v448, %v613
    %v646 = vadd.f32 %v449, %v614
    %v647 = vadd.f32 %v450, %v615
    %v648 = vadd.f32 %v451, %v616
    %v649 = vadd.f32 %v452, %v617
    %v650 = vadd.f32 %v453, %v618
    %v651 = vadd.f32 %v454, %v619
    %v652 = vadd.f32 %v455, %v620
    %v653 = vadd.f32 %v456, %v621
    %v654 = vadd.f32 %v457, %v622
    %v655 = vadd.f32 %v458, %v623
    %v656 = vadd.f32 %v459, %v624
    %v657 = vadd.f32 %v460, %v625
    %v658 = vadd.f32 %v461, %v626
    %v659 = vadd.f32 %v462, %v627
    %v660 = vadd.f32 %v463, %v628
    %v661 = vadd.f32 %v464, %v629
    %v662 = vadd.f32 %v465, %v630
    %v663 = vadd.f32 %v466, %v631
    %v664 = vadd.f32 %v467, %v632
    %v665 = vld [vmem:[%s1 + $0x3] sm:$0x1]
    %666 = vset.pattern.permute.xlu0 3
    %667 = vperm.xlu0 %666, %v42
    %v668 = vpop.permute.xlu0 %667
    %670 = vset.pattern.permute.xlu0 3
    %671 = vperm.xlu0 %670, %v43
    %v672 = vpop.permute.xlu0 %671
    %674 = vset.pattern.permute.xlu0 3
    %675 = vperm.xlu0 %674, %v44
    %v676 = vpop.permute.xlu0 %675
    %678 = vset.pattern.permute.xlu0 3
    %679 = vperm.xlu0 %678, %v45
    %v680 = vpop.permute.xlu0 %679
    %682 = vset.pattern.permute.xlu0 3
    %683 = vperm.xlu0 %682, %v46
    %v684 = vpop.permute.xlu0 %683
    %686 = vset.pattern.permute.xlu0 3
    %687 = vperm.xlu0 %686, %v47
    %v688 = vpop.permute.xlu0 %687
    %690 = vset.pattern.permute.xlu0 3
    %691 = vperm.xlu0 %690, %v48
    %v692 = vpop.permute.xlu0 %691
    %694 = vset.pattern.permute.xlu0 3
    %695 = vperm.xlu0 %694, %v49
    %v696 = vpop.permute.xlu0 %695
    %698 = vset.pattern.permute.xlu0 3
    %699 = vperm.xlu0 %698, %v50
    %v700 = vpop.permute.xlu0 %699
    %702 = vset.pattern.permute.xlu0 3
    %703 = vperm.xlu0 %702, %v51
    %v704 = vpop.permute.xlu0 %703
    %706 = vset.pattern.permute.xlu0 3
    %707 = vperm.xlu0 %706, %v52
    %v708 = vpop.permute.xlu0 %707
    %710 = vset.pattern.permute.xlu0 3
    %711 = vperm.xlu0 %710, %v53
    %v712 = vpop.permute.xlu0 %711
    %714 = vset.pattern.permute.xlu0 3
    %715 = vperm.xlu0 %714, %v54
    %v716 = vpop.permute.xlu0 %715
    %718 = vset.pattern.permute.xlu0 3
    %719 = vperm.xlu0 %718, %v55
    %v720 = vpop.permute.xlu0 %719
    %722 = vset.pattern.permute.xlu0 3
    %723 = vperm.xlu0 %722, %v56
    %v724 = vpop.permute.xlu0 %723
    %726 = vset.pattern.permute.xlu0 3
    %727 = vperm.xlu0 %726, %v57
    %v728 = vpop.permute.xlu0 %727
    %730 = vset.pattern.permute.xlu0 3
    %731 = vperm.xlu0 %730, %v58
    %v732 = vpop.permute.xlu0 %731
    %734 = vset.pattern.permute.xlu0 3
    %735 = vperm.xlu0 %734, %v59
    %v736 = vpop.permute.xlu0 %735
    %738 = vset.pattern.permute.xlu0 3
    %739 = vperm.xlu0 %738, %v60
    %v740 = vpop.permute.xlu0 %739
    %742 = vset.pattern.permute.xlu0 3
    %743 = vperm.xlu0 %742, %v61
    %v744 = vpop.permute.xlu0 %743
    %746 = vset.pattern.permute.xlu0 3
    %747 = vperm.xlu0 %746, %v62
    %v748 = vpop.permute.xlu0 %747
    %750 = vset.pattern.permute.xlu0 3
    %751 = vperm.xlu0 %750, %v63
    %v752 = vpop.permute.xlu0 %751
    %754 = vset.pattern.permute.xlu0 3
    %755 = vperm.xlu0 %754, %v64
    %v756 = vpop.permute.xlu0 %755
    %758 = vset.pattern.permute.xlu0 3
    %759 = vperm.xlu0 %758, %v65
    %v760 = vpop.permute.xlu0 %759
    %762 = vset.pattern.permute.xlu0 3
    %763 = vperm.xlu0 %762, %v66
    %v764 = vpop.permute.xlu0 %763
    %766 = vset.pattern.permute.xlu0 3
    %767 = vperm.xlu0 %766, %v67
    %v768 = vpop.permute.xlu0 %767
    %770 = vset.pattern.permute.xlu0 3
    %771 = vperm.xlu0 %770, %v68
    %v772 = vpop.permute.xlu0 %771
    %774 = vset.pattern.permute.xlu0 3
    %775 = vperm.xlu0 %774, %v69
    %v776 = vpop.permute.xlu0 %775
    %778 = vset.pattern.permute.xlu0 3
    %779 = vperm.xlu0 %778, %v70
    %v780 = vpop.permute.xlu0 %779
    %782 = vset.pattern.permute.xlu0 3
    %783 = vperm.xlu0 %782, %v71
    %v784 = vpop.permute.xlu0 %783
    %786 = vset.pattern.permute.xlu0 3
    %787 = vperm.xlu0 %786, %v72
    %v788 = vpop.permute.xlu0 %787
    %790 = vset.pattern.permute.xlu0 3
    %791 = vperm.xlu0 %790, %v73
    %v792 = vpop.permute.xlu0 %791
    %v794 = vlaneseq
    %v795 = vshrl.u32 %v794, 7
    %v796 = vsub.s32 0, %v795
    %v797 = vrot.slane %v665, %v796
    %v798 = vmul.f32 %v668, %v797
    %v799 = vmul.f32 %v672, %v797
    %v800 = vmul.f32 %v676, %v797
    %v801 = vmul.f32 %v680, %v797
    %v802 = vmul.f32 %v684, %v797
    %v803 = vmul.f32 %v688, %v797
    %v804 = vmul.f32 %v692, %v797
    %v805 = vmul.f32 %v696, %v797
    %v806 = vmul.f32 %v700, %v797
    %v807 = vmul.f32 %v704, %v797
    %v808 = vmul.f32 %v708, %v797
    %v809 = vmul.f32 %v712, %v797
    %v810 = vmul.f32 %v716, %v797
    %v811 = vmul.f32 %v720, %v797
    %v812 = vmul.f32 %v724, %v797
    %v813 = vmul.f32 %v728, %v797
    %v814 = vmul.f32 %v732, %v797
    %v815 = vmul.f32 %v736, %v797
    %v816 = vmul.f32 %v740, %v797
    %v817 = vmul.f32 %v744, %v797
    %v818 = vmul.f32 %v748, %v797
    %v819 = vmul.f32 %v752, %v797
    %v820 = vmul.f32 %v756, %v797
    %v821 = vmul.f32 %v760, %v797
    %v822 = vmul.f32 %v764, %v797
    %v823 = vmul.f32 %v768, %v797
    %v824 = vmul.f32 %v772, %v797
    %v825 = vmul.f32 %v776, %v797
    %v826 = vmul.f32 %v780, %v797
    %v827 = vmul.f32 %v784, %v797
    %v828 = vmul.f32 %v788, %v797
    %v829 = vmul.f32 %v792, %v797
    %v830 = vadd.f32 %v633, %v798
    %v831 = vadd.f32 %v634, %v799
    %v832 = vadd.f32 %v635, %v800
    %v833 = vadd.f32 %v636, %v801
    %v834 = vadd.f32 %v637, %v802
    %v835 = vadd.f32 %v638, %v803
    %v836 = vadd.f32 %v639, %v804
    %v837 = vadd.f32 %v640, %v805
    %v838 = vadd.f32 %v641, %v806
    %v839 = vadd.f32 %v642, %v807
    %v840 = vadd.f32 %v643, %v808
    %v841 = vadd.f32 %v644, %v809
    %v842 = vadd.f32 %v645, %v810
    %v843 = vadd.f32 %v646, %v811
    %v844 = vadd.f32 %v647, %v812
    %v845 = vadd.f32 %v648, %v813
    %v846 = vadd.f32 %v649, %v814
    %v847 = vadd.f32 %v650, %v815
    %v848 = vadd.f32 %v651, %v816
    %v849 = vadd.f32 %v652, %v817
    %v850 = vadd.f32 %v653, %v818
    %v851 = vadd.f32 %v654, %v819
    %v852 = vadd.f32 %v655, %v820
    %v853 = vadd.f32 %v656, %v821
    %v854 = vadd.f32 %v657, %v822
    %v855 = vadd.f32 %v658, %v823
    %v856 = vadd.f32 %v659, %v824
    %v857 = vadd.f32 %v660, %v825
    %v858 = vadd.f32 %v661, %v826
    %v859 = vadd.f32 %v662, %v827
    %v860 = vadd.f32 %v663, %v828
    %v861 = vadd.f32 %v664, %v829
    %v862 = vld [vmem:[%s2] sm:$0x1]
    %v864 = vlaneseq
    %v865 = vshrl.u32 %v864, 7
    %v866 = vsub.s32 0, %v865
    %v867 = vrot.slane %v862, %v866
    %v869 = vadd.f32 %v830, %v867
    %v870 = vadd.f32 %v831, %v867
    %v871 = vadd.f32 %v832, %v867
    %v872 = vadd.f32 %v833, %v867
    %v873 = vadd.f32 %v834, %v867
    %v874 = vadd.f32 %v835, %v867
    %v875 = vadd.f32 %v836, %v867
    %v876 = vadd.f32 %v837, %v867
    %v877 = vadd.f32 %v838, %v867
    %v878 = vadd.f32 %v839, %v867
    %v879 = vadd.f32 %v840, %v867
    %v880 = vadd.f32 %v841, %v867
    %v881 = vadd.f32 %v842, %v867
    %v882 = vadd.f32 %v843, %v867
    %v883 = vadd.f32 %v844, %v867
    %v884 = vadd.f32 %v845, %v867
    %v885 = vadd.f32 %v846, %v867
    %v886 = vadd.f32 %v847, %v867
    %v887 = vadd.f32 %v848, %v867
    %v888 = vadd.f32 %v849, %v867
    %v889 = vadd.f32 %v850, %v867
    %v890 = vadd.f32 %v851, %v867
    %v891 = vadd.f32 %v852, %v867
    %v892 = vadd.f32 %v853, %v867
    %v893 = vadd.f32 %v854, %v867
    %v894 = vadd.f32 %v855, %v867
    %v895 = vadd.f32 %v856, %v867
    %v896 = vadd.f32 %v857, %v867
    %v897 = vadd.f32 %v858, %v867
    %v898 = vadd.f32 %v859, %v867
    %v899 = vadd.f32 %v860, %v867
    %v900 = vadd.f32 %v861, %v867
    %v901 = vmax.f32 %v869, 0.0
    %v902 = vmax.f32 %v870, 0.0
    %v903 = vmax.f32 %v871, 0.0
    %v904 = vmax.f32 %v872, 0.0
    %v905 = vmax.f32 %v873, 0.0
    %v906 = vmax.f32 %v874, 0.0
    %v907 = vmax.f32 %v875, 0.0
    %v908 = vmax.f32 %v876, 0.0
    %v909 = vmax.f32 %v877, 0.0
    %v910 = vmax.f32 %v878, 0.0
    %v911 = vmax.f32 %v879, 0.0
    %v912 = vmax.f32 %v880, 0.0
    %v913 = vmax.f32 %v881, 0.0
    %v914 = vmax.f32 %v882, 0.0
    %v915 = vmax.f32 %v883, 0.0
    %v916 = vmax.f32 %v884, 0.0
    %v917 = vmax.f32 %v885, 0.0
    %v918 = vmax.f32 %v886, 0.0
    %v919 = vmax.f32 %v887, 0.0
    %v920 = vmax.f32 %v888, 0.0
    %v921 = vmax.f32 %v889, 0.0
    %v922 = vmax.f32 %v890, 0.0
    %v923 = vmax.f32 %v891, 0.0
    %v924 = vmax.f32 %v892, 0.0
    %v925 = vmax.f32 %v893, 0.0
    %v926 = vmax.f32 %v894, 0.0
    %v927 = vmax.f32 %v895, 0.0
    %v928 = vmax.f32 %v896, 0.0
    %v929 = vmax.f32 %v897, 0.0
    %v930 = vmax.f32 %v898, 0.0
    %v931 = vmax.f32 %v899, 0.0
    %v932 = vmax.f32 %v900, 0.0
    %v933 = vpack.c.bf16 %v902, %v901
    %v934 = vpack.c.bf16 %v904, %v903
    %v935 = vpack.c.bf16 %v906, %v905
    %v936 = vpack.c.bf16 %v908, %v907
    %v937 = vpack.c.bf16 %v910, %v909
    %v938 = vpack.c.bf16 %v912, %v911
    %v939 = vpack.c.bf16 %v914, %v913
    %v940 = vpack.c.bf16 %v916, %v915
    %v941 = vpack.c.bf16 %v918, %v917
    %v942 = vpack.c.bf16 %v920, %v919
    %v943 = vpack.c.bf16 %v922, %v921
    %v944 = vpack.c.bf16 %v924, %v923
    %v945 = vpack.c.bf16 %v926, %v925
    %v946 = vpack.c.bf16 %v928, %v927
    %v947 = vpack.c.bf16 %v930, %v929
    %v948 = vpack.c.bf16 %v932, %v931
    %v949 = vld [vmem:[#allocation2] sm:$0xf]
    %v950 = vld [vmem:[#allocation2 + $0x4] sm:$0xf]
    %v951 = vld [vmem:[#allocation2 + $0x8] sm:$0xf]
    %v952 = vld [vmem:[#allocation2 + $0xc] sm:$0xf]
    %v953 = vld [vmem:[#allocation2 + $0x10] sm:$0xf]
    %v954 = vld [vmem:[#allocation2 + $0x14] sm:$0xf]
    %v955 = vld [vmem:[#allocation2 + $0x18] sm:$0xf]
    %v956 = vld [vmem:[#allocation2 + $0x1c] sm:$0xf]
    %v957 = vld [vmem:[#allocation2 + $0x20] sm:$0xf]
    %v958 = vld [vmem:[#allocation2 + $0x24] sm:$0xf]
    %v959 = vld [vmem:[#allocation2 + $0x28] sm:$0xf]
    %v960 = vld [vmem:[#allocation2 + $0x2c] sm:$0xf]
    %v961 = vld [vmem:[#allocation2 + $0x30] sm:$0xf]
    %v962 = vld [vmem:[#allocation2 + $0x34] sm:$0xf]
    %v963 = vld [vmem:[#allocation2 + $0x38] sm:$0xf]
    %v964 = vld [vmem:[#allocation2 + $0x3c] sm:$0xf]
    %v965 = vld [vmem:[%s4] sm:$0x1]
    %v967 = vlaneseq
    %v968 = vshrl.u32 %v967, 7
    %v969 = vsub.s32 0, %v968
    %v970 = vrot.slane %v965, %v969
    %v988 = vunpack.c.l.b16 %v949
    %v989 = vunpack.c.l.b16 %v950
    %v990 = vunpack.c.l.b16 %v951
    %v991 = vunpack.c.l.b16 %v952
    %v992 = vunpack.c.l.b16 %v953
    %v993 = vunpack.c.l.b16 %v954
    %v994 = vunpack.c.l.b16 %v955
    %v995 = vunpack.c.l.b16 %v956
    %v996 = vunpack.c.l.b16 %v957
    %v997 = vunpack.c.l.b16 %v958
    %v998 = vunpack.c.l.b16 %v959
    %v999 = vunpack.c.l.b16 %v960
    %v1000 = vunpack.c.l.b16 %v961
    %v1001 = vunpack.c.l.b16 %v962
    %v1002 = vunpack.c.l.b16 %v963
    %v1003 = vunpack.c.l.b16 %v964
    %v1004 = vpack.c.b16 %v989, %v988
    %v1005 = vpack.c.b16 %v991, %v990
    %v1006 = vpack.c.b16 %v993, %v992
    %v1007 = vpack.c.b16 %v995, %v994
    %v1008 = vpack.c.b16 %v997, %v996
    %v1009 = vpack.c.b16 %v999, %v998
    %v1010 = vpack.c.b16 %v1001, %v1000
    %v1011 = vpack.c.b16 %v1003, %v1002
    %1020 = vmatprep.subr.bf16.mxu0 0
    %1021 = vmatpush1.bf16.msra.mxu0 %v1004
    %1022 = vmatprep.subr.bf16.mxu0 0
    %1023 = vmatpush1.bf16.msra.mxu0 %v1005
    %1024 = vmatprep.subr.bf16.mxu0 0
    %1025 = vmatpush1.bf16.msra.mxu0 %v1006
    %1026 = vmatprep.subr.bf16.mxu0 0
    %1027 = vmatpush1.bf16.msra.mxu0 %v1007
    %1028 = vmatprep.subr.bf16.mxu0 0
    %1029 = vmatpush1.bf16.msra.mxu0 %v1008
    %1030 = vmatprep.subr.bf16.mxu0 0
    %1031 = vmatpush1.bf16.msra.mxu0 %v1009
    %1032 = vmatprep.subr.bf16.mxu0 0
    %1033 = vmatpush1.bf16.msra.mxu0 %v1010
    %1034 = vmatprep.subr.bf16.mxu0 0
    %1035 = vmatpush1.bf16.msra.mxu0 %v1011
    %1036 = vmatprep.subr.bf16.mxu0 0
    %1037 = vmatpush1.bf16.msra.mxu0 0
    %1038 = vmatprep.subr.bf16.mxu0 0
    %1039 = vmatpush1.bf16.msra.mxu0 0
    %1040 = vmatprep.subr.bf16.mxu0 0
    %1041 = vmatpush1.bf16.msra.mxu0 0
    %1042 = vmatprep.subr.bf16.mxu0 0
    %1043 = vmatpush1.bf16.msra.mxu0 0
    %1044 = vmatprep.subr.bf16.mxu0 0
    %1045 = vmatpush1.bf16.msra.mxu0 0
    %1046 = vmatprep.subr.bf16.mxu0 0
    %1047 = vmatpush1.bf16.msra.mxu0 0
    %1048 = vmatprep.subr.bf16.mxu0 0
    %1049 = vmatpush1.bf16.msra.mxu0 0
    %1050 = vmatprep.subr.bf16.mxu0 0
    %1051 = vmatpush1.bf16.msra.mxu0 0
    %1052 = vmatprep.mubr.bf16.mxu0 0
    %1053 = vmatmul.mubr.bf16.gmra.mrb[0].mxu0 %v933
    %v1054 = vpop.f32.mrb[0].mxu0
    %v1055 = vadd.f32 %v970, %v1054
    %v1056 = vpop.f32.mrb[0].mxu0
    %v1057 = vpop.f32.mrb[0].mxu0
    %v1058 = vadd.f32 %v970, %v1057
    %v1059 = vpop.f32.mrb[0].mxu0
    %1060 = vmatprep.mubr.bf16.mxu0 0
    %1061 = vmatmul.mubr.bf16.gmra.mrb[0].mxu0 %v934
    %v1062 = vpop.f32.mrb[0].mxu0
    %v1063 = vadd.f32 %v970, %v1062
    %v1064 = vpop.f32.mrb[0].mxu0
    %v1065 = vpop.f32.mrb[0].mxu0
    %v1066 = vadd.f32 %v970, %v1065
    %v1067 = vpop.f32.mrb[0].mxu0
    %1068 = vmatprep.mubr.bf16.mxu0 0
    %1069 = vmatmul.mubr.bf16.gmra.mrb[0].mxu0 %v935
    %v1070 = vpop.f32.mrb[0].mxu0
    %v1071 = vadd.f32 %v970, %v1070
    %v1072 = vpop.f32.mrb[0].mxu0
    %v1073 = vpop.f32.mrb[0].mxu0
    %v1074 = vadd.f32 %v970, %v1073
    %v1075 = vpop.f32.mrb[0].mxu0
    %1076 = vmatprep.mubr.bf16.mxu0 0
    %1077 = vmatmul.mubr.bf16.gmra.mrb[0].mxu0 %v936
    %v1078 = vpop.f32.mrb[0].mxu0
    %v1079 = vadd.f32 %v970, %v1078
    %v1080 = vpop.f32.mrb[0].mxu0
    %v1081 = vpop.f32.mrb[0].mxu0
    %v1082 = vadd.f32 %v970, %v1081
    %v1083 = vpop.f32.mrb[0].mxu0
    %1084 = vmatprep.mubr.bf16.mxu0 0
    %1085 = vmatmul.mubr.bf16.gmra.mrb[0].mxu0 %v937
    %v1086 = vpop.f32.mrb[0].mxu0
    %v1087 = vadd.f32 %v970, %v1086
    %v1088 = vpop.f32.mrb[0].mxu0
    %v1089 = vpop.f32.mrb[0].mxu0
    %v1090 = vadd.f32 %v970, %v1089
    %v1091 = vpop.f32.mrb[0].mxu0
    %1092 = vmatprep.mubr.bf16.mxu0 0
    %1093 = vmatmul.mubr.bf16.gmra.mrb[0].mxu0 %v938
    %v1094 = vpop.f32.mrb[0].mxu0
    %v1095 = vadd.f32 %v970, %v1094
    %v1096 = vpop.f32.mrb[0].mxu0
    %v1097 = vpop.f32.mrb[0].mxu0
    %v1098 = vadd.f32 %v970, %v1097
    %v1099 = vpop.f32.mrb[0].mxu0
    %1100 = vmatprep.mubr.bf16.mxu0 0
    %1101 = vmatmul.mubr.bf16.gmra.mrb[0].mxu0 %v939
    %v1102 = vpop.f32.mrb[0].mxu0
    %v1103 = vadd.f32 %v970, %v1102
    %v1104 = vpop.f32.mrb[0].mxu0
    %v1105 = vpop.f32.mrb[0].mxu0
    %v1106 = vadd.f32 %v970, %v1105
    %v1107 = vpop.f32.mrb[0].mxu0
    %1108 = vmatprep.mubr.bf16.mxu0 0
    %1109 = vmatmul.mubr.bf16.gmra.mrb[0].mxu0 %v940
    %v1110 = vpop.f32.mrb[0].mxu0
    %v1111 = vadd.f32 %v970, %v1110
    %v1112 = vpop.f32.mrb[0].mxu0
    %v1113 = vpop.f32.mrb[0].mxu0
    %v1114 = vadd.f32 %v970, %v1113
    %v1115 = vpop.f32.mrb[0].mxu0
    %1116 = vmatprep.mubr.bf16.mxu0 0
    %1117 = vmatmul.mubr.bf16.gmra.mrb[0].mxu0 %v941
    %v1118 = vpop.f32.mrb[0].mxu0
    %v1119 = vadd.f32 %v970, %v1118
    %v1120 = vpop.f32.mrb[0].mxu0
    %v1121 = vpop.f32.mrb[0].mxu0
    %v1122 = vadd.f32 %v970, %v1121
    %v1123 = vpop.f32.mrb[0].mxu0
    %1124 = vmatprep.mubr.bf16.mxu0 0
    %1125 = vmatmul.mubr.bf16.gmra.mrb[0].mxu0 %v942
    %v1126 = vpop.f32.mrb[0].mxu0
    %v1127 = vadd.f32 %v970, %v1126
    %v1128 = vpop.f32.mrb[0].mxu0
    %v1129 = vpop.f32.mrb[0].mxu0
    %v1130 = vadd.f32 %v970, %v1129
    %v1131 = vpop.f32.mrb[0].mxu0
    %1132 = vmatprep.mubr.bf16.mxu0 0
    %1133 = vmatmul.mubr.bf16.gmra.mrb[0].mxu0 %v943
    %v1134 = vpop.f32.mrb[0].mxu0
    %v1135 = vadd.f32 %v970, %v1134
    %v1136 = vpop.f32.mrb[0].mxu0
    %v1137 = vpop.f32.mrb[0].mxu0
    %v1138 = vadd.f32 %v970, %v1137
    %v1139 = vpop.f32.mrb[0].mxu0
    %1140 = vmatprep.mubr.bf16.mxu0 0
    %1141 = vmatmul.mubr.bf16.gmra.mrb[0].mxu0 %v944
    %v1142 = vpop.f32.mrb[0].mxu0
    %v1143 = vadd.f32 %v970, %v1142
    %v1144 = vpop.f32.mrb[0].mxu0
    %v1145 = vpop.f32.mrb[0].mxu0
    %v1146 = vadd.f32 %v970, %v1145
    %v1147 = vpop.f32.mrb[0].mxu0
    %1148 = vmatprep.mubr.bf16.mxu0 0
    %1149 = vmatmul.mubr.bf16.gmra.mrb[0].mxu0 %v945
    %v1150 = vpop.f32.mrb[0].mxu0
    %v1151 = vadd.f32 %v970, %v1150
    %v1152 = vpop.f32.mrb[0].mxu0
    %v1153 = vpop.f32.mrb[0].mxu0
    %v1154 = vadd.f32 %v970, %v1153
    %v1155 = vpop.f32.mrb[0].mxu0
    %1156 = vmatprep.mubr.bf16.mxu0 0
    %1157 = vmatmul.mubr.bf16.gmra.mrb[0].mxu0 %v946
    %v1158 = vpop.f32.mrb[0].mxu0
    %v1159 = vadd.f32 %v970, %v1158
    %v1160 = vpop.f32.mrb[0].mxu0
    %v1161 = vpop.f32.mrb[0].mxu0
    %v1162 = vadd.f32 %v970, %v1161
    %v1163 = vpop.f32.mrb[0].mxu0
    %1164 = vmatprep.mubr.bf16.mxu0 0
    %1165 = vmatmul.mubr.bf16.gmra.mrb[0].mxu0 %v947
    %v1166 = vpop.f32.mrb[0].mxu0
    %v1167 = vadd.f32 %v970, %v1166
    %v1168 = vpop.f32.mrb[0].mxu0
    %v1169 = vpop.f32.mrb[0].mxu0
    %v1170 = vadd.f32 %v970, %v1169
    %v1171 = vpop.f32.mrb[0].mxu0
    %1172 = vmatprep.mubr.bf16.mxu0 0
    %1173 = vmatmul.mubr.bf16.gmra.mrb[0].mxu0 %v948
    %v1174 = vpop.f32.mrb[0].mxu0
    %v1175 = vadd.f32 %v970, %v1174
    %v1176 = vpop.f32.mrb[0].mxu0
    %v1177 = vpop.f32.mrb[0].mxu0
    %v1178 = vadd.f32 %v970, %v1177
    %v1179 = vpop.f32.mrb[0].mxu0
    %1180 = vdwg.mxu0
    %v1181 = vmax.f32 %v1055, 0.0
    %v1182 = vmax.f32 %v1058, 0.0
    %v1183 = vmax.f32 %v1063, 0.0
    %v1184 = vmax.f32 %v1066, 0.0
    %v1185 = vmax.f32 %v1071, 0.0
    %v1186 = vmax.f32 %v1074, 0.0
    %v1187 = vmax.f32 %v1079, 0.0
    %v1188 = vmax.f32 %v1082, 0.0
    %v1189 = vmax.f32 %v1087, 0.0
    %v1190 = vmax.f32 %v1090, 0.0
    %v1191 = vmax.f32 %v1095, 0.0
    %v1192 = vmax.f32 %v1098, 0.0
    %v1193 = vmax.f32 %v1103, 0.0
    %v1194 = vmax.f32 %v1106, 0.0
    %v1195 = vmax.f32 %v1111, 0.0
    %v1196 = vmax.f32 %v1114, 0.0
    %v1197 = vmax.f32 %v1119, 0.0
    %v1198 = vmax.f32 %v1122, 0.0
    %v1199 = vmax.f32 %v1127, 0.0
    %v1200 = vmax.f32 %v1130, 0.0
    %v1201 = vmax.f32 %v1135, 0.0
    %v1202 = vmax.f32 %v1138, 0.0
    %v1203 = vmax.f32 %v1143, 0.0
    %v1204 = vmax.f32 %v1146, 0.0
    %v1205 = vmax.f32 %v1151, 0.0
    %v1206 = vmax.f32 %v1154, 0.0
    %v1207 = vmax.f32 %v1159, 0.0
    %v1208 = vmax.f32 %v1162, 0.0
    %v1209 = vmax.f32 %v1167, 0.0
    %v1210 = vmax.f32 %v1170, 0.0
    %v1211 = vmax.f32 %v1175, 0.0
    %v1212 = vmax.f32 %v1178, 0.0
    %v1213 = vpack.c.bf16 %v1182, %v1181
    %v1214 = vpack.c.bf16 %v1184, %v1183
    %v1215 = vpack.c.bf16 %v1186, %v1185
    %v1216 = vpack.c.bf16 %v1188, %v1187
    %v1217 = vpack.c.bf16 %v1190, %v1189
    %v1218 = vpack.c.bf16 %v1192, %v1191
    %v1219 = vpack.c.bf16 %v1194, %v1193
    %v1220 = vpack.c.bf16 %v1196, %v1195
    %v1221 = vpack.c.bf16 %v1198, %v1197
    %v1222 = vpack.c.bf16 %v1200, %v1199
    %v1223 = vpack.c.bf16 %v1202, %v1201
    %v1224 = vpack.c.bf16 %v1204, %v1203
    %v1225 = vpack.c.bf16 %v1206, %v1205
    %v1226 = vpack.c.bf16 %v1208, %v1207
    %v1227 = vpack.c.bf16 %v1210, %v1209
    %v1228 = vpack.c.bf16 %v1212, %v1211
    %v1229 = vld [vmem:[%s5] sm:$0xff]
    %v1230 = vld [vmem:[%s5 + $0x8] sm:$0xff]
    %v1231 = vld [vmem:[%s5 + $0x10] sm:$0xff]
    %v1232 = vld [vmem:[%s5 + $0x18] sm:$0xff]
    %v1233 = vld [vmem:[%s5 + $0x20] sm:$0xff]
    %v1234 = vld [vmem:[%s5 + $0x28] sm:$0xff]
    %v1235 = vld [vmem:[%s5 + $0x30] sm:$0xff]
    %v1236 = vld [vmem:[%s5 + $0x38] sm:$0xff]
    %v1237 = vld [vmem:[%s5 + $0x40] sm:$0xff]
    %v1238 = vld [vmem:[%s5 + $0x48] sm:$0xff]
    %v1239 = vld [vmem:[%s5 + $0x50] sm:$0xff]
    %v1240 = vld [vmem:[%s5 + $0x58] sm:$0xff]
    %v1241 = vld [vmem:[%s5 + $0x60] sm:$0xff]
    %v1242 = vld [vmem:[%s5 + $0x68] sm:$0xff]
    %v1243 = vld [vmem:[%s5 + $0x70] sm:$0xff]
    %v1244 = vld [vmem:[%s5 + $0x78] sm:$0xff]
    %v1245 = vld [vmem:[%s5 + $0x80] sm:$0xff]
    %v1246 = vld [vmem:[%s5 + $0x88] sm:$0xff]
    %v1247 = vld [vmem:[%s5 + $0x90] sm:$0xff]
    %v1248 = vld [vmem:[%s5 + $0x98] sm:$0xff]
    %v1249 = vld [vmem:[%s5 + $0xa0] sm:$0xff]
    %v1250 = vld [vmem:[%s5 + $0xa8] sm:$0xff]
    %v1251 = vld [vmem:[%s5 + $0xb0] sm:$0xff]
    %v1252 = vld [vmem:[%s5 + $0xb8] sm:$0xff]
    %v1253 = vld [vmem:[%s5 + $0xc0] sm:$0xff]
    %v1254 = vld [vmem:[%s5 + $0xc8] sm:$0xff]
    %v1255 = vld [vmem:[%s5 + $0xd0] sm:$0xff]
    %v1256 = vld [vmem:[%s5 + $0xd8] sm:$0xff]
    %v1257 = vld [vmem:[%s5 + $0xe0] sm:$0xff]
    %v1258 = vld [vmem:[%s5 + $0xe8] sm:$0xff]
    %v1259 = vld [vmem:[%s5 + $0xf0] sm:$0xff]
    %v1260 = vld [vmem:[%s5 + $0xf8] sm:$0xff]
    %v1261 = vld [vmem:[%s6] sm:$0xf]
    %v1263 = vlaneseq
    %v1264 = vshrl.u32 %v1263, 7
    %v1265 = vsub.s32 0, %v1264
    %v1266 = vrot.slane %v1261, %v1265
    %v1267 = vlaneseq
    %v1268 = vshrl.u32 %v1267, 7
    %v1269 = vsub.s32 1, %v1268
    %v1270 = vrot.slane %v1261, %v1269
    %v1271 = vlaneseq
    %v1272 = vshrl.u32 %v1271, 7
    %v1273 = vsub.s32 2, %v1272
    %v1274 = vrot.slane %v1261, %v1273
    %v1275 = vlaneseq
    %v1276 = vshrl.u32 %v1275, 7
    %v1277 = vsub.s32 3, %v1276
    %v1278 = vrot.slane %v1261, %v1277
    %v1315 = vunpack.c.l.b16 %v1229
    %v1316 = vunpack.c.h.b16 %v1229
    %v1317 = vunpack.c.l.b16 %v1230
    %v1318 = vunpack.c.h.b16 %v1230
    %v1319 = vunpack.c.l.b16 %v1231
    %v1320 = vunpack.c.h.b16 %v1231
    %v1321 = vunpack.c.l.b16 %v1232
    %v1322 = vunpack.c.h.b16 %v1232
    %v1323 = vunpack.c.l.b16 %v1233
    %v1324 = vunpack.c.h.b16 %v1233
    %v1325 = vunpack.c.l.b16 %v1234
    %v1326 = vunpack.c.h.b16 %v1234
    %v1327 = vunpack.c.l.b16 %v1235
    %v1328 = vunpack.c.h.b16 %v1235
    %v1329 = vunpack.c.l.b16 %v1236
    %v1330 = vunpack.c.h.b16 %v1236
    %v1331 = vunpack.c.l.b16 %v1237
    %v1332 = vunpack.c.h.b16 %v1237
    %v1333 = vunpack.c.l.b16 %v1238
    %v1334 = vunpack.c.h.b16 %v1238
    %v1335 = vunpack.c.l.b16 %v1239
    %v1336 = vunpack.c.h.b16 %v1239
    %v1337 = vunpack.c.l.b16 %v1240
    %v1338 = vunpack.c.h.b16 %v1240
    %v1339 = vunpack.c.l.b16 %v1241
    %v1340 = vunpack.c.h.b16 %v1241
    %v1341 = vunpack.c.l.b16 %v1242
    %v1342 = vunpack.c.h.b16 %v1242
    %v1343 = vunpack.c.l.b16 %v1243
    %v1344 = vunpack.c.h.b16 %v1243
    %v1345 = vunpack.c.l.b16 %v1244
    %v1346 = vunpack.c.h.b16 %v1244
    %v1347 = vunpack.c.l.b16 %v1245
    %v1348 = vunpack.c.h.b16 %v1245
    %v1349 = vunpack.c.l.b16 %v1246
    %v1350 = vunpack.c.h.b16 %v1246
    %v1351 = vunpack.c.l.b16 %v1247
    %v1352 = vunpack.c.h.b16 %v1247
    %v1353 = vunpack.c.l.b16 %v1248
    %v1354 = vunpack.c.h.b16 %v1248
    %v1355 = vunpack.c.l.b16 %v1249
    %v1356 = vunpack.c.h.b16 %v1249
    %v1357 = vunpack.c.l.b16 %v1250
    %v1358 = vunpack.c.h.b16 %v1250
    %v1359 = vunpack.c.l.b16 %v1251
    %v1360 = vunpack.c.h.b16 %v1251
    %v1361 = vunpack.c.l.b16 %v1252
    %v1362 = vunpack.c.h.b16 %v1252
    %v1363 = vunpack.c.l.b16 %v1253
    %v1364 = vunpack.c.h.b16 %v1253
    %v1365 = vunpack.c.l.b16 %v1254
    %v1366 = vunpack.c.h.b16 %v1254
    %v1367 = vunpack.c.l.b16 %v1255
    %v1368 = vunpack.c.h.b16 %v1255
    %v1369 = vunpack.c.l.b16 %v1256
    %v1370 = vunpack.c.h.b16 %v1256
    %v1371 = vunpack.c.l.b16 %v1257
    %v1372 = vunpack.c.h.b16 %v1257
    %v1373 = vunpack.c.l.b16 %v1258
    %v1374 = vunpack.c.h.b16 %v1258
    %v1375 = vunpack.c.l.b16 %v1259
    %v1376 = vunpack.c.h.b16 %v1259
    %v1377 = vunpack.c.l.b16 %v1260
    %v1378 = vunpack.c.h.b16 %v1260
    %v1379 = vpack.c.b16 %v1319, %v1315
    %v1380 = vpack.c.b16 %v1320, %v1316
    %v1381 = vpack.c.b16 %v1321, %v1317
    %v1382 = vpack.c.b16 %v1322, %v1318
    %v1383 = vpack.c.b16 %v1327, %v1323
    %v1384 = vpack.c.b16 %v1328, %v1324
    %v1385 = vpack.c.b16 %v1329, %v1325
    %v1386 = vpack.c.b16 %v1330, %v1326
    %v1387 = vpack.c.b16 %v1335, %v1331
    %v1388 = vpack.c.b16 %v1336, %v1332
    %v1389 = vpack.c.b16 %v1337, %v1333
    %v1390 = vpack.c.b16 %v1338, %v1334
    %v1391 = vpack.c.b16 %v1343, %v1339
    %v1392 = vpack.c.b16 %v1344, %v1340
    %v1393 = vpack.c.b16 %v1345, %v1341
    %v1394 = vpack.c.b16 %v1346, %v1342
    %v1395 = vpack.c.b16 %v1351, %v1347
    %v1396 = vpack.c.b16 %v1352, %v1348
    %v1397 = vpack.c.b16 %v1353, %v1349
    %v1398 = vpack.c.b16 %v1354, %v1350
    %v1399 = vpack.c.b16 %v1359, %v1355
    %v1400 = vpack.c.b16 %v1360, %v1356
    %v1401 = vpack.c.b16 %v1361, %v1357
    %v1402 = vpack.c.b16 %v1362, %v1358
    %v1403 = vpack.c.b16 %v1367, %v1363
    %v1404 = vpack.c.b16 %v1368, %v1364
    %v1405 = vpack.c.b16 %v1369, %v1365
    %v1406 = vpack.c.b16 %v1370, %v1366
    %v1407 = vpack.c.b16 %v1375, %v1371
    %v1408 = vpack.c.b16 %v1376, %v1372
    %v1409 = vpack.c.b16 %v1377, %v1373
    %v1410 = vpack.c.b16 %v1378, %v1374
    %1443 = vmatprep.subr.bf16.mxu0 %v1380
    %1444 = vmatpush1.bf16.msra.mxu0 %v1379
    %1445 = vmatprep.subr.bf16.mxu0 %v1384
    %1446 = vmatpush1.bf16.msra.mxu0 %v1383
    %1447 = vmatprep.subr.bf16.mxu0 %v1388
    %1448 = vmatpush1.bf16.msra.mxu0 %v1387
    %1449 = vmatprep.subr.bf16.mxu0 %v1392
    %1450 = vmatpush1.bf16.msra.mxu0 %v1391
    %1451 = vmatprep.subr.bf16.mxu0 %v1396
    %1452 = vmatpush1.bf16.msra.mxu0 %v1395
    %1453 = vmatprep.subr.bf16.mxu0 %v1400
    %1454 = vmatpush1.bf16.msra.mxu0 %v1399
    %1455 = vmatprep.subr.bf16.mxu0 %v1404
    %1456 = vmatpush1.bf16.msra.mxu0 %v1403
    %1457 = vmatprep.subr.bf16.mxu0 %v1408
    %1458 = vmatpush1.bf16.msra.mxu0 %v1407
    %1459 = vmatprep.subr.bf16.mxu0 0
    %1460 = vmatpush1.bf16.msra.mxu0 0
    %1461 = vmatprep.subr.bf16.mxu0 0
    %1462 = vmatpush1.bf16.msra.mxu0 0
    %1463 = vmatprep.subr.bf16.mxu0 0
    %1464 = vmatpush1.bf16.msra.mxu0 0
    %1465 = vmatprep.subr.bf16.mxu0 0
    %1466 = vmatpush1.bf16.msra.mxu0 0
    %1467 = vmatprep.subr.bf16.mxu0 0
    %1468 = vmatpush1.bf16.msra.mxu0 0
    %1469 = vmatprep.subr.bf16.mxu0 0
    %1470 = vmatpush1.bf16.msra.mxu0 0
    %1471 = vmatprep.subr.bf16.mxu0 0
    %1472 = vmatpush1.bf16.msra.mxu0 0
    %1473 = vmatprep.subr.bf16.mxu0 0
    %1474 = vmatpush1.bf16.msra.mxu0 0
    %1475 = vmatprep.mubr.bf16.mxu0 0
    %1476 = vmatmul.mubr.bf16.gmra.mrb[0].mxu0 %v1213
    %v1477 = vpop.f32.mrb[0].mxu0
    %v1478 = vadd.f32 %v1266, %v1477
    %v1479 = vpop.f32.mrb[0].mxu0
    %v1480 = vadd.f32 %v1270, %v1479
    %v1481 = vpop.f32.mrb[0].mxu0
    %v1482 = vadd.f32 %v1266, %v1481
    %v1483 = vpop.f32.mrb[0].mxu0
    %v1484 = vadd.f32 %v1270, %v1483
    %1485 = vmatprep.mubr.bf16.mxu0 0
    %1486 = vmatmul.mubr.bf16.gmra.mrb[0].mxu0 %v1214
    %v1487 = vpop.f32.mrb[0].mxu0
    %v1488 = vadd.f32 %v1266, %v1487
    %v1489 = vpop.f32.mrb[0].mxu0
    %v1490 = vadd.f32 %v1270, %v1489
    %v1491 = vpop.f32.mrb[0].mxu0
    %v1492 = vadd.f32 %v1266, %v1491
    %v1493 = vpop.f32.mrb[0].mxu0
    %v1494 = vadd.f32 %v1270, %v1493
    %1495 = vmatprep.mubr.bf16.mxu0 0
    %1496 = vmatmul.mubr.bf16.gmra.mrb[0].mxu0 %v1215
    %v1497 = vpop.f32.mrb[0].mxu0
    %v1498 = vadd.f32 %v1266, %v1497
    %v1499 = vpop.f32.mrb[0].mxu0
    %v1500 = vadd.f32 %v1270, %v1499
    %v1501 = vpop.f32.mrb[0].mxu0
    %v1502 = vadd.f32 %v1266, %v1501
    %v1503 = vpop.f32.mrb[0].mxu0
    %v1504 = vadd.f32 %v1270, %v1503
    %1505 = vmatprep.mubr.bf16.mxu0 0
    %1506 = vmatmul.mubr.bf16.gmra.mrb[0].mxu0 %v1216
    %v1507 = vpop.f32.mrb[0].mxu0
    %v1508 = vadd.f32 %v1266, %v1507
    %v1509 = vpop.f32.mrb[0].mxu0
    %v1510 = vadd.f32 %v1270, %v1509
    %v1511 = vpop.f32.mrb[0].mxu0
    %v1512 = vadd.f32 %v1266, %v1511
    %v1513 = vpop.f32.mrb[0].mxu0
    %v1514 = vadd.f32 %v1270, %v1513
    %1515 = vmatprep.mubr.bf16.mxu0 0
    %1516 = vmatmul.mubr.bf16.gmra.mrb[0].mxu0 %v1217
    %v1517 = vpop.f32.mrb[0].mxu0
    %v1518 = vadd.f32 %v1266, %v1517
    %v1519 = vpop.f32.mrb[0].mxu0
    %v1520 = vadd.f32 %v1270, %v1519
    %v1521 = vpop.f32.mrb[0].mxu0
    %v1522 = vadd.f32 %v1266, %v1521
    %v1523 = vpop.f32.mrb[0].mxu0
    %v1524 = vadd.f32 %v1270, %v1523
    %1525 = vmatprep.mubr.bf16.mxu0 0
    %1526 = vmatmul.mubr.bf16.gmra.mrb[0].mxu0 %v1218
    %v1527 = vpop.f32.mrb[0].mxu0
    %v1528 = vadd.f32 %v1266, %v1527
    %v1529 = vpop.f32.mrb[0].mxu0
    %v1530 = vadd.f32 %v1270, %v1529
    %v1531 = vpop.f32.mrb[0].mxu0
    %v1532 = vadd.f32 %v1266, %v1531
    %v1533 = vpop.f32.mrb[0].mxu0
    %v1534 = vadd.f32 %v1270, %v1533
    %1535 = vmatprep.mubr.bf16.mxu0 0
    %1536 = vmatmul.mubr.bf16.gmra.mrb[0].mxu0 %v1219
    %v1537 = vpop.f32.mrb[0].mxu0
    %v1538 = vadd.f32 %v1266, %v1537
    %v1539 = vpop.f32.mrb[0].mxu0
    %v1540 = vadd.f32 %v1270, %v1539
    %v1541 = vpop.f32.mrb[0].mxu0
    %v1542 = vadd.f32 %v1266, %v1541
    %v1543 = vpop.f32.mrb[0].mxu0
    %v1544 = vadd.f32 %v1270, %v1543
    %1545 = vmatprep.mubr.bf16.mxu0 0
    %1546 = vmatmul.mubr.bf16.gmra.mrb[0].mxu0 %v1220
    %v1547 = vpop.f32.mrb[0].mxu0
    %v1548 = vadd.f32 %v1266, %v1547
    %v1549 = vpop.f32.mrb[0].mxu0
    %v1550 = vadd.f32 %v1270, %v1549
    %v1551 = vpop.f32.mrb[0].mxu0
    %v1552 = vadd.f32 %v1266, %v1551
    %v1553 = vpop.f32.mrb[0].mxu0
    %v1554 = vadd.f32 %v1270, %v1553
    %1555 = vmatprep.mubr.bf16.mxu0 0
    %1556 = vmatmul.mubr.bf16.gmra.mrb[0].mxu0 %v1221
    %v1557 = vpop.f32.mrb[0].mxu0
    %v1558 = vadd.f32 %v1266, %v1557
    %v1559 = vpop.f32.mrb[0].mxu0
    %v1560 = vadd.f32 %v1270, %v1559
    %v1561 = vpop.f32.mrb[0].mxu0
    %v1562 = vadd.f32 %v1266, %v1561
    %v1563 = vpop.f32.mrb[0].mxu0
    %v1564 = vadd.f32 %v1270, %v1563
    %1565 = vmatprep.mubr.bf16.mxu0 0
    %1566 = vmatmul.mubr.bf16.gmra.mrb[0].mxu0 %v1222
    %v1567 = vpop.f32.mrb[0].mxu0
    %v1568 = vadd.f32 %v1266, %v1567
    %v1569 = vpop.f32.mrb[0].mxu0
    %v1570 = vadd.f32 %v1270, %v1569
    %v1571 = vpop.f32.mrb[0].mxu0
    %v1572 = vadd.f32 %v1266, %v1571
    %v1573 = vpop.f32.mrb[0].mxu0
    %v1574 = vadd.f32 %v1270, %v1573
    %1575 = vmatprep.mubr.bf16.mxu0 0
    %1576 = vmatmul.mubr.bf16.gmra.mrb[0].mxu0 %v1223
    %v1577 = vpop.f32.mrb[0].mxu0
    %v1578 = vadd.f32 %v1266, %v1577
    %v1579 = vpop.f32.mrb[0].mxu0
    %v1580 = vadd.f32 %v1270, %v1579
    %v1581 = vpop.f32.mrb[0].mxu0
    %v1582 = vadd.f32 %v1266, %v1581
    %v1583 = vpop.f32.mrb[0].mxu0
    %v1584 = vadd.f32 %v1270, %v1583
    %1585 = vmatprep.mubr.bf16.mxu0 0
    %1586 = vmatmul.mubr.bf16.gmra.mrb[0].mxu0 %v1224
    %v1587 = vpop.f32.mrb[0].mxu0
    %v1588 = vadd.f32 %v1266, %v1587
    %v1589 = vpop.f32.mrb[0].mxu0
    %v1590 = vadd.f32 %v1270, %v1589
    %v1591 = vpop.f32.mrb[0].mxu0
    %v1592 = vadd.f32 %v1266, %v1591
    %v1593 = vpop.f32.mrb[0].mxu0
    %v1594 = vadd.f32 %v1270, %v1593
    %1595 = vmatprep.mubr.bf16.mxu0 0
    %1596 = vmatmul.mubr.bf16.gmra.mrb[0].mxu0 %v1225
    %v1597 = vpop.f32.mrb[0].mxu0
    %v1598 = vadd.f32 %v1266, %v1597
    %v1599 = vpop.f32.mrb[0].mxu0
    %v1600 = vadd.f32 %v1270, %v1599
    %v1601 = vpop.f32.mrb[0].mxu0
    %v1602 = vadd.f32 %v1266, %v1601
    %v1603 = vpop.f32.mrb[0].mxu0
    %v1604 = vadd.f32 %v1270, %v1603
    %1605 = vmatprep.mubr.bf16.mxu0 0
    %1606 = vmatmul.mubr.bf16.gmra.mrb[0].mxu0 %v1226
    %v1607 = vpop.f32.mrb[0].mxu0
    %v1608 = vadd.f32 %v1266, %v1607
    %v1609 = vpop.f32.mrb[0].mxu0
    %v1610 = vadd.f32 %v1270, %v1609
    %v1611 = vpop.f32.mrb[0].mxu0
    %v1612 = vadd.f32 %v1266, %v1611
    %v1613 = vpop.f32.mrb[0].mxu0
    %v1614 = vadd.f32 %v1270, %v1613
    %1615 = vmatprep.mubr.bf16.mxu0 0
    %1616 = vmatmul.mubr.bf16.gmra.mrb[0].mxu0 %v1227
    %v1617 = vpop.f32.mrb[0].mxu0
    %v1618 = vadd.f32 %v1266, %v1617
    %v1619 = vpop.f32.mrb[0].mxu0
    %v1620 = vadd.f32 %v1270, %v1619
    %v1621 = vpop.f32.mrb[0].mxu0
    %v1622 = vadd.f32 %v1266, %v1621
    %v1623 = vpop.f32.mrb[0].mxu0
    %v1624 = vadd.f32 %v1270, %v1623
    %1625 = vmatprep.mubr.bf16.mxu0 0
    %1626 = vmatmul.mubr.bf16.gmra.mrb[0].mxu0 %v1228
    %v1627 = vpop.f32.mrb[0].mxu0
    %v1628 = vadd.f32 %v1266, %v1627
    %v1629 = vpop.f32.mrb[0].mxu0
    %v1630 = vadd.f32 %v1270, %v1629
    %v1631 = vpop.f32.mrb[0].mxu0
    %v1632 = vadd.f32 %v1266, %v1631
    %v1633 = vpop.f32.mrb[0].mxu0
    %v1634 = vadd.f32 %v1270, %v1633
    %1635 = vdwg.mxu0
    %1636 = vmatprep.subr.bf16.mxu0 %v1382
    %1637 = vmatpush1.bf16.msra.mxu0 %v1381
    %1638 = vmatprep.subr.bf16.mxu0 %v1386
    %1639 = vmatpush1.bf16.msra.mxu0 %v1385
    %1640 = vmatprep.subr.bf16.mxu0 %v1390
    %1641 = vmatpush1.bf16.msra.mxu0 %v1389
    %1642 = vmatprep.subr.bf16.mxu0 %v1394
    %1643 = vmatpush1.bf16.msra.mxu0 %v1393
    %1644 = vmatprep.subr.bf16.mxu0 %v1398
    %1645 = vmatpush1.bf16.msra.mxu0 %v1397
    %1646 = vmatprep.subr.bf16.mxu0 %v1402
    %1647 = vmatpush1.bf16.msra.mxu0 %v1401
    %1648 = vmatprep.subr.bf16.mxu0 %v1406
    %1649 = vmatpush1.bf16.msra.mxu0 %v1405
    %1650 = vmatprep.subr.bf16.mxu0 %v1410
    %1651 = vmatpush1.bf16.msra.mxu0 %v1409
    %1652 = vmatprep.subr.bf16.mxu0 0
    %1653 = vmatpush1.bf16.msra.mxu0 0
    %1654 = vmatprep.subr.bf16.mxu0 0
    %1655 = vmatpush1.bf16.msra.mxu0 0
    %1656 = vmatprep.subr.bf16.mxu0 0
    %1657 = vmatpush1.bf16.msra.mxu0 0
    %1658 = vmatprep.subr.bf16.mxu0 0
    %1659 = vmatpush1.bf16.msra.mxu0 0
    %1660 = vmatprep.subr.bf16.mxu0 0
    %1661 = vmatpush1.bf16.msra.mxu0 0
    %1662 = vmatprep.subr.bf16.mxu0 0
    %1663 = vmatpush1.bf16.msra.mxu0 0
    %1664 = vmatprep.subr.bf16.mxu0 0
    %1665 = vmatpush1.bf16.msra.mxu0 0
    %1666 = vmatprep.subr.bf16.mxu0 0
    %1667 = vmatpush1.bf16.msra.mxu0 0
    %1668 = vmatprep.mubr.bf16.mxu0 0
    %1669 = vmatmul.mubr.bf16.gmra.mrb[0].mxu0 %v1213
    %v1670 = vpop.f32.mrb[0].mxu0
    %v1671 = vadd.f32 %v1274, %v1670
    %v1672 = vpop.f32.mrb[0].mxu0
    %v1673 = vadd.f32 %v1278, %v1672
    %v1674 = vpop.f32.mrb[0].mxu0
    %v1675 = vadd.f32 %v1274, %v1674
    %v1676 = vpop.f32.mrb[0].mxu0
    %v1677 = vadd.f32 %v1278, %v1676
    %1678 = vmatprep.mubr.bf16.mxu0 0
    %1679 = vmatmul.mubr.bf16.gmra.mrb[0].mxu0 %v1214
    %v1680 = vpop.f32.mrb[0].mxu0
    %v1681 = vadd.f32 %v1274, %v1680
    %v1682 = vpop.f32.mrb[0].mxu0
    %v1683 = vadd.f32 %v1278, %v1682
    %v1684 = vpop.f32.mrb[0].mxu0
    %v1685 = vadd.f32 %v1274, %v1684
    %v1686 = vpop.f32.mrb[0].mxu0
    %v1687 = vadd.f32 %v1278, %v1686
    %1688 = vmatprep.mubr.bf16.mxu0 0
    %1689 = vmatmul.mubr.bf16.gmra.mrb[0].mxu0 %v1215
    %v1690 = vpop.f32.mrb[0].mxu0
    %v1691 = vadd.f32 %v1274, %v1690
    %v1692 = vpop.f32.mrb[0].mxu0
    %v1693 = vadd.f32 %v1278, %v1692
    %v1694 = vpop.f32.mrb[0].mxu0
    %v1695 = vadd.f32 %v1274, %v1694
    %v1696 = vpop.f32.mrb[0].mxu0
    %v1697 = vadd.f32 %v1278, %v1696
    %1698 = vmatprep.mubr.bf16.mxu0 0
    %1699 = vmatmul.mubr.bf16.gmra.mrb[0].mxu0 %v1216
    %v1700 = vpop.f32.mrb[0].mxu0
    %v1701 = vadd.f32 %v1274, %v1700
    %v1702 = vpop.f32.mrb[0].mxu0
    %v1703 = vadd.f32 %v1278, %v1702
    %v1704 = vpop.f32.mrb[0].mxu0
    %v1705 = vadd.f32 %v1274, %v1704
    %v1706 = vpop.f32.mrb[0].mxu0
    %v1707 = vadd.f32 %v1278, %v1706
    %1708 = vmatprep.mubr.bf16.mxu0 0
    %1709 = vmatmul.mubr.bf16.gmra.mrb[0].mxu0 %v1217
    %v1710 = vpop.f32.mrb[0].mxu0
    %v1711 = vadd.f32 %v1274, %v1710
    %v1712 = vpop.f32.mrb[0].mxu0
    %v1713 = vadd.f32 %v1278, %v1712
    %v1714 = vpop.f32.mrb[0].mxu0
    %v1715 = vadd.f32 %v1274, %v1714
    %v1716 = vpop.f32.mrb[0].mxu0
    %v1717 = vadd.f32 %v1278, %v1716
    %1718 = vmatprep.mubr.bf16.mxu0 0
    %1719 = vmatmul.mubr.bf16.gmra.mrb[0].mxu0 %v1218
    %v1720 = vpop.f32.mrb[0].mxu0
    %v1721 = vadd.f32 %v1274, %v1720
    %v1722 = vpop.f32.mrb[0].mxu0
    %v1723 = vadd.f32 %v1278, %v1722
    %v1724 = vpop.f32.mrb[0].mxu0
    %v1725 = vadd.f32 %v1274, %v1724
    %v1726 = vpop.f32.mrb[0].mxu0
    %v1727 = vadd.f32 %v1278, %v1726
    %1728 = vmatprep.mubr.bf16.mxu0 0
    %1729 = vmatmul.mubr.bf16.gmra.mrb[0].mxu0 %v1219
    %v1730 = vpop.f32.mrb[0].mxu0
    %v1731 = vadd.f32 %v1274, %v1730
    %v1732 = vpop.f32.mrb[0].mxu0
    %v1733 = vadd.f32 %v1278, %v1732
    %v1734 = vpop.f32.mrb[0].mxu0
    %v1735 = vadd.f32 %v1274, %v1734
    %v1736 = vpop.f32.mrb[0].mxu0
    %v1737 = vadd.f32 %v1278, %v1736
    %1738 = vmatprep.mubr.bf16.mxu0 0
    %1739 = vmatmul.mubr.bf16.gmra.mrb[0].mxu0 %v1220
    %v1740 = vpop.f32.mrb[0].mxu0
    %v1741 = vadd.f32 %v1274, %v1740
    %v1742 = vpop.f32.mrb[0].mxu0
    %v1743 = vadd.f32 %v1278, %v1742
    %v1744 = vpop.f32.mrb[0].mxu0
    %v1745 = vadd.f32 %v1274, %v1744
    %v1746 = vpop.f32.mrb[0].mxu0
    %v1747 = vadd.f32 %v1278, %v1746
    %1748 = vmatprep.mubr.bf16.mxu0 0
    %1749 = vmatmul.mubr.bf16.gmra.mrb[0].mxu0 %v1221
    %v1750 = vpop.f32.mrb[0].mxu0
    %v1751 = vadd.f32 %v1274, %v1750
    %v1752 = vpop.f32.mrb[0].mxu0
    %v1753 = vadd.f32 %v1278, %v1752
    %v1754 = vpop.f32.mrb[0].mxu0
    %v1755 = vadd.f32 %v1274, %v1754
    %v1756 = vpop.f32.mrb[0].mxu0
    %v1757 = vadd.f32 %v1278, %v1756
    %1758 = vmatprep.mubr.bf16.mxu0 0
    %1759 = vmatmul.mubr.bf16.gmra.mrb[0].mxu0 %v1222
    %v1760 = vpop.f32.mrb[0].mxu0
    %v1761 = vadd.f32 %v1274, %v1760
    %v1762 = vpop.f32.mrb[0].mxu0
    %v1763 = vadd.f32 %v1278, %v1762
    %v1764 = vpop.f32.mrb[0].mxu0
    %v1765 = vadd.f32 %v1274, %v1764
    %v1766 = vpop.f32.mrb[0].mxu0
    %v1767 = vadd.f32 %v1278, %v1766
    %1768 = vmatprep.mubr.bf16.mxu0 0
    %1769 = vmatmul.mubr.bf16.gmra.mrb[0].mxu0 %v1223
    %v1770 = vpop.f32.mrb[0].mxu0
    %v1771 = vadd.f32 %v1274, %v1770
    %v1772 = vpop.f32.mrb[0].mxu0
    %v1773 = vadd.f32 %v1278, %v1772
    %v1774 = vpop.f32.mrb[0].mxu0
    %v1775 = vadd.f32 %v1274, %v1774
    %v1776 = vpop.f32.mrb[0].mxu0
    %v1777 = vadd.f32 %v1278, %v1776
    %1778 = vmatprep.mubr.bf16.mxu0 0
    %1779 = vmatmul.mubr.bf16.gmra.mrb[0].mxu0 %v1224
    %v1780 = vpop.f32.mrb[0].mxu0
    %v1781 = vadd.f32 %v1274, %v1780
    %v1782 = vpop.f32.mrb[0].mxu0
    %v1783 = vadd.f32 %v1278, %v1782
    %v1784 = vpop.f32.mrb[0].mxu0
    %v1785 = vadd.f32 %v1274, %v1784
    %v1786 = vpop.f32.mrb[0].mxu0
    %v1787 = vadd.f32 %v1278, %v1786
    %1788 = vmatprep.mubr.bf16.mxu0 0
    %1789 = vmatmul.mubr.bf16.gmra.mrb[0].mxu0 %v1225
    %v1790 = vpop.f32.mrb[0].mxu0
    %v1791 = vadd.f32 %v1274, %v1790
    %v1792 = vpop.f32.mrb[0].mxu0
    %v1793 = vadd.f32 %v1278, %v1792
    %v1794 = vpop.f32.mrb[0].mxu0
    %v1795 = vadd.f32 %v1274, %v1794
    %v1796 = vpop.f32.mrb[0].mxu0
    %v1797 = vadd.f32 %v1278, %v1796
    %1798 = vmatprep.mubr.bf16.mxu0 0
    %1799 = vmatmul.mubr.bf16.gmra.mrb[0].mxu0 %v1226
    %v1800 = vpop.f32.mrb[0].mxu0
    %v1801 = vadd.f32 %v1274, %v1800
    %v1802 = vpop.f32.mrb[0].mxu0
    %v1803 = vadd.f32 %v1278, %v1802
    %v1804 = vpop.f32.mrb[0].mxu0
    %v1805 = vadd.f32 %v1274, %v1804
    %v1806 = vpop.f32.mrb[0].mxu0
    %v1807 = vadd.f32 %v1278, %v1806
    %1808 = vmatprep.mubr.bf16.mxu0 0
    %1809 = vmatmul.mubr.bf16.gmra.mrb[0].mxu0 %v1227
    %v1810 = vpop.f32.mrb[0].mxu0
    %v1811 = vadd.f32 %v1274, %v1810
    %v1812 = vpop.f32.mrb[0].mxu0
    %v1813 = vadd.f32 %v1278, %v1812
    %v1814 = vpop.f32.mrb[0].mxu0
    %v1815 = vadd.f32 %v1274, %v1814
    %v1816 = vpop.f32.mrb[0].mxu0
    %v1817 = vadd.f32 %v1278, %v1816
    %1818 = vmatprep.mubr.bf16.mxu0 0
    %1819 = vmatmul.mubr.bf16.gmra.mrb[0].mxu0 %v1228
    %v1820 = vpop.f32.mrb[0].mxu0
    %v1821 = vadd.f32 %v1274, %v1820
    %v1822 = vpop.f32.mrb[0].mxu0
    %v1823 = vadd.f32 %v1278, %v1822
    %v1824 = vpop.f32.mrb[0].mxu0
    %v1825 = vadd.f32 %v1274, %v1824
    %v1826 = vpop.f32.mrb[0].mxu0
    %v1827 = vadd.f32 %v1278, %v1826
    %1828 = vdwg.mxu0
    %v1829 = vmax.f32 %v1478, 0.0
    %v1830 = vmax.f32 %v1480, 0.0
    %v1831 = vmax.f32 %v1671, 0.0
    %v1832 = vmax.f32 %v1673, 0.0
    %v1833 = vmax.f32 %v1482, 0.0
    %v1834 = vmax.f32 %v1484, 0.0
    %v1835 = vmax.f32 %v1675, 0.0
    %v1836 = vmax.f32 %v1677, 0.0
    %v1837 = vmax.f32 %v1488, 0.0
    %v1838 = vmax.f32 %v1490, 0.0
    %v1839 = vmax.f32 %v1681, 0.0
    %v1840 = vmax.f32 %v1683, 0.0
    %v1841 = vmax.f32 %v1492, 0.0
    %v1842 = vmax.f32 %v1494, 0.0
    %v1843 = vmax.f32 %v1685, 0.0
    %v1844 = vmax.f32 %v1687, 0.0
    %v1845 = vmax.f32 %v1498, 0.0
    %v1846 = vmax.f32 %v1500, 0.0
    %v1847 = vmax.f32 %v1691, 0.0
    %v1848 = vmax.f32 %v1693, 0.0
    %v1849 = vmax.f32 %v1502, 0.0
    %v1850 = vmax.f32 %v1504, 0.0
    %v1851 = vmax.f32 %v1695, 0.0
    %v1852 = vmax.f32 %v1697, 0.0
    %v1853 = vmax.f32 %v1508, 0.0
    %v1854 = vmax.f32 %v1510, 0.0
    %v1855 = vmax.f32 %v1701, 0.0
    %v1856 = vmax.f32 %v1703, 0.0
    %v1857 = vmax.f32 %v1512, 0.0
    %v1858 = vmax.f32 %v1514, 0.0
    %v1859 = vmax.f32 %v1705, 0.0
    %v1860 = vmax.f32 %v1707, 0.0
    %v1861 = vmax.f32 %v1518, 0.0
    %v1862 = vmax.f32 %v1520, 0.0
    %v1863 = vmax.f32 %v1711, 0.0
    %v1864 = vmax.f32 %v1713, 0.0
    %v1865 = vmax.f32 %v1522, 0.0
    %v1866 = vmax.f32 %v1524, 0.0
    %v1867 = vmax.f32 %v1715, 0.0
    %v1868 = vmax.f32 %v1717, 0.0
    %v1869 = vmax.f32 %v1528, 0.0
    %v1870 = vmax.f32 %v1530, 0.0
    %v1871 = vmax.f32 %v1721, 0.0
    %v1872 = vmax.f32 %v1723, 0.0
    %v1873 = vmax.f32 %v1532, 0.0
    %v1874 = vmax.f32 %v1534, 0.0
    %v1875 = vmax.f32 %v1725, 0.0
    %v1876 = vmax.f32 %v1727, 0.0
    %v1877 = vmax.f32 %v1538, 0.0
    %v1878 = vmax.f32 %v1540, 0.0
    %v1879 = vmax.f32 %v1731, 0.0
    %v1880 = vmax.f32 %v1733, 0.0
    %v1881 = vmax.f32 %v1542, 0.0
    %v1882 = vmax.f32 %v1544, 0.0
    %v1883 = vmax.f32 %v1735, 0.0
    %v1884 = vmax.f32 %v1737, 0.0
    %v1885 = vmax.f32 %v1548, 0.0
    %v1886 = vmax.f32 %v1550, 0.0
    %v1887 = vmax.f32 %v1741, 0.0
    %v1888 = vmax.f32 %v1743, 0.0
    %v1889 = vmax.f32 %v1552, 0.0
    %v1890 = vmax.f32 %v1554, 0.0
    %v1891 = vmax.f32 %v1745, 0.0
    %v1892 = vmax.f32 %v1747, 0.0
    %v1893 = vmax.f32 %v1558, 0.0
    %v1894 = vmax.f32 %v1560, 0.0
    %v1895 = vmax.f32 %v1751, 0.0
    %v1896 = vmax.f32 %v1753, 0.0
    %v1897 = vmax.f32 %v1562, 0.0
    %v1898 = vmax.f32 %v1564, 0.0
    %v1899 = vmax.f32 %v1755, 0.0
    %v1900 = vmax.f32 %v1757, 0.0
    %v1901 = vmax.f32 %v1568, 0.0
    %v1902 = vmax.f32 %v1570, 0.0
    %v1903 = vmax.f32 %v1761, 0.0
    %v1904 = vmax.f32 %v1763, 0.0
    %v1905 = vmax.f32 %v1572, 0.0
    %v1906 = vmax.f32 %v1574, 0.0
    %v1907 = vmax.f32 %v1765, 0.0
    %v1908 = vmax.f32 %v1767, 0.0
    %v1909 = vmax.f32 %v1578, 0.0
    %v1910 = vmax.f32 %v1580, 0.0
    %v1911 = vmax.f32 %v1771, 0.0
    %v1912 = vmax.f32 %v1773, 0.0
    %v1913 = vmax.f32 %v1582, 0.0
    %v1914 = vmax.f32 %v1584, 0.0
    %v1915 = vmax.f32 %v1775, 0.0
    %v1916 = vmax.f32 %v1777, 0.0
    %v1917 = vmax.f32 %v1588, 0.0
    %v1918 = vmax.f32 %v1590, 0.0
    %v1919 = vmax.f32 %v1781, 0.0
    %v1920 = vmax.f32 %v1783, 0.0
    %v1921 = vmax.f32 %v1592, 0.0
    %v1922 = vmax.f32 %v1594, 0.0
    %v1923 = vmax.f32 %v1785, 0.0
    %v1924 = vmax.f32 %v1787, 0.0
    %v1925 = vmax.f32 %v1598, 0.0
    %v1926 = vmax.f32 %v1600, 0.0
    %v1927 = vmax.f32 %v1791, 0.0
    %v1928 = vmax.f32 %v1793, 0.0
    %v1929 = vmax.f32 %v1602, 0.0
    %v1930 = vmax.f32 %v1604, 0.0
    %v1931 = vmax.f32 %v1795, 0.0
    %v1932 = vmax.f32 %v1797, 0.0
    %v1933 = vmax.f32 %v1608, 0.0
    %v1934 = vmax.f32 %v1610, 0.0
    %v1935 = vmax.f32 %v1801, 0.0
    %v1936 = vmax.f32 %v1803, 0.0
    %v1937 = vmax.f32 %v1612, 0.0
    %v1938 = vmax.f32 %v1614, 0.0
    %v1939 = vmax.f32 %v1805, 0.0
    %v1940 = vmax.f32 %v1807, 0.0
    %v1941 = vmax.f32 %v1618, 0.0
    %v1942 = vmax.f32 %v1620, 0.0
    %v1943 = vmax.f32 %v1811, 0.0
    %v1944 = vmax.f32 %v1813, 0.0
    %v1945 = vmax.f32 %v1622, 0.0
    %v1946 = vmax.f32 %v1624, 0.0
    %v1947 = vmax.f32 %v1815, 0.0
    %v1948 = vmax.f32 %v1817, 0.0
    %v1949 = vmax.f32 %v1628, 0.0
    %v1950 = vmax.f32 %v1630, 0.0
    %v1951 = vmax.f32 %v1821, 0.0
    %v1952 = vmax.f32 %v1823, 0.0
    %v1953 = vmax.f32 %v1632, 0.0
    %v1954 = vmax.f32 %v1634, 0.0
    %v1955 = vmax.f32 %v1825, 0.0
    %v1956 = vmax.f32 %v1827, 0.0
    %v1957 = vmax.f32 %v1829, %v1833
    %v1958 = vmax.f32 %v1957, %v1837
    %v1959 = vmax.f32 %v1958, %v1841
    %v1960 = vmax.f32 %v1959, %v1845
    %v1961 = vmax.f32 %v1960, %v1849
    %v1962 = vmax.f32 %v1961, %v1853
    %v1963 = vmax.f32 %v1962, %v1857
    %v1964 = vmax.f32 %v1963, %v1861
    %v1965 = vmax.f32 %v1964, %v1865
    %v1966 = vmax.f32 %v1965, %v1869
    %v1967 = vmax.f32 %v1966, %v1873
    %v1968 = vmax.f32 %v1967, %v1877
    %v1969 = vmax.f32 %v1968, %v1881
    %v1970 = vmax.f32 %v1969, %v1885
    %v1971 = vmax.f32 %v1970, %v1889
    %v1972 = vrot.slane %v1971, 4
    %v1973 = vmax.f32 %v1971, %v1972
    %v1974 = vrot.slane %v1973, 2
    %v1975 = vmax.f32 %v1973, %v1974
    %v1976 = vrot.slane %v1975, 1
    %v1977 = vmax.f32 %v1975, %v1976
    %v1978 = vmax.f32 %v1830, %v1834
    %v1979 = vmax.f32 %v1978, %v1838
    %v1980 = vmax.f32 %v1979, %v1842
    %v1981 = vmax.f32 %v1980, %v1846
    %v1982 = vmax.f32 %v1981, %v1850
    %v1983 = vmax.f32 %v1982, %v1854
    %v1984 = vmax.f32 %v1983, %v1858
    %v1985 = vmax.f32 %v1984, %v1862
    %v1986 = vmax.f32 %v1985, %v1866
    %v1987 = vmax.f32 %v1986, %v1870
    %v1988 = vmax.f32 %v1987, %v1874
    %v1989 = vmax.f32 %v1988, %v1878
    %v1990 = vmax.f32 %v1989, %v1882
    %v1991 = vmax.f32 %v1990, %v1886
    %v1992 = vmax.f32 %v1991, %v1890
    %v1993 = vrot.slane %v1992, 4
    %v1994 = vmax.f32 %v1992, %v1993
    %v1995 = vrot.slane %v1994, 2
    %v1996 = vmax.f32 %v1994, %v1995
    %v1997 = vrot.slane %v1996, 1
    %v1998 = vmax.f32 %v1996, %v1997
    %v1999 = vmax.f32 %v1831, %v1835
    %v2000 = vmax.f32 %v1999, %v1839
    %v2001 = vmax.f32 %v2000, %v1843
    %v2002 = vmax.f32 %v2001, %v1847
    %v2003 = vmax.f32 %v2002, %v1851
    %v2004 = vmax.f32 %v2003, %v1855
    %v2005 = vmax.f32 %v2004, %v1859
    %v2006 = vmax.f32 %v2005, %v1863
    %v2007 = vmax.f32 %v2006, %v1867
    %v2008 = vmax.f32 %v2007, %v1871
    %v2009 = vmax.f32 %v2008, %v1875
    %v2010 = vmax.f32 %v2009, %v1879
    %v2011 = vmax.f32 %v2010, %v1883
    %v2012 = vmax.f32 %v2011, %v1887
    %v2013 = vmax.f32 %v2012, %v1891
    %v2014 = vrot.slane %v2013, 4
    %v2015 = vmax.f32 %v2013, %v2014
    %v2016 = vrot.slane %v2015, 2
    %v2017 = vmax.f32 %v2015, %v2016
    %v2018 = vrot.slane %v2017, 1
    %v2019 = vmax.f32 %v2017, %v2018
    %v2020 = vmax.f32 %v1832, %v1836
    %v2021 = vmax.f32 %v2020, %v1840
    %v2022 = vmax.f32 %v2021, %v1844
    %v2023 = vmax.f32 %v2022, %v1848
    %v2024 = vmax.f32 %v2023, %v1852
    %v2025 = vmax.f32 %v2024, %v1856
    %v2026 = vmax.f32 %v2025, %v1860
    %v2027 = vmax.f32 %v2026, %v1864
    %v2028 = vmax.f32 %v2027, %v1868
    %v2029 = vmax.f32 %v2028, %v1872
    %v2030 = vmax.f32 %v2029, %v1876
    %v2031 = vmax.f32 %v2030, %v1880
    %v2032 = vmax.f32 %v2031, %v1884
    %v2033 = vmax.f32 %v2032, %v1888
    %v2034 = vmax.f32 %v2033, %v1892
    %v2035 = vrot.slane %v2034, 4
    %v2036 = vmax.f32 %v2034, %v2035
    %v2037 = vrot.slane %v2036, 2
    %v2038 = vmax.f32 %v2036, %v2037
    %v2039 = vrot.slane %v2038, 1
    %v2040 = vmax.f32 %v2038, %v2039
    %v2045 = vcombine.low %v1977, %v1998
    %v2046 = vcombine.low %v2019, %v2040
    %v2048 = vunpack.c.l.s4 1966171168
    %v2049 = vunpack.c.0.s8 %v2048
    %v2050 = vlaneseq
    %v2051 = vshrl.u32 %v2050, 7
    %v2052 = vsub.s32 %v2049, %v2051
    %v2053 = vrot.slane %v2045, %v2052
    %v2055 = vunpack.c.l.s4 1966171168
    %v2056 = vunpack.c.0.s8 %v2055
    %v2057 = vlaneseq
    %v2058 = vshrl.u32 %v2057, 7
    %v2059 = vsub.s32 %v2056, %v2058
    %v2060 = vrot.slane %v2046, %v2059
    %v2061 = vcombine.low %v2053, %v2060
    %v2063 = vunpack.c.l.s4 1966171168
    %v2064 = vunpack.c.0.s8 %v2063
    %v2065 = vlaneseq
    %v2066 = vshrl.u32 %v2065, 7
    %v2067 = vsub.s32 %v2064, %v2066
    %v2068 = vrot.slane %v2061, %v2067
    %v2070 = vlaneseq
    %vm2071 = vcmp.ge.s32.totalorder %v2070, 0
    %vm2072 = vcmp.lt.s32.totalorder %v2070, 512
    %vm2073 = vmand %vm2071, %vm2072
    %2074 = vst.msk [vmem:[#allocation5] ss:$2 sm:$0xf] %vm2073, %v2068
    %v2075 = vmax.f32 %v1893, %v1897
    %v2076 = vmax.f32 %v2075, %v1901
    %v2077 = vmax.f32 %v2076, %v1905
    %v2078 = vmax.f32 %v2077, %v1909
    %v2079 = vmax.f32 %v2078, %v1913
    %v2080 = vmax.f32 %v2079, %v1917
    %v2081 = vmax.f32 %v2080, %v1921
    %v2082 = vmax.f32 %v2081, %v1925
    %v2083 = vmax.f32 %v2082, %v1929
    %v2084 = vmax.f32 %v2083, %v1933
    %v2085 = vmax.f32 %v2084, %v1937
    %v2086 = vmax.f32 %v2085, %v1941
    %v2087 = vmax.f32 %v2086, %v1945
    %v2088 = vmax.f32 %v2087, %v1949
    %v2089 = vmax.f32 %v2088, %v1953
    %v2090 = vrot.slane %v2089, 4
    %v2091 = vmax.f32 %v2089, %v2090
    %v2092 = vrot.slane %v2091, 2
    %v2093 = vmax.f32 %v2091, %v2092
    %v2094 = vrot.slane %v2093, 1
    %v2095 = vmax.f32 %v2093, %v2094
    %v2096 = vmax.f32 %v1894, %v1898
    %v2097 = vmax.f32 %v2096, %v1902
    %v2098 = vmax.f32 %v2097, %v1906
    %v2099 = vmax.f32 %v2098, %v1910
    %v2100 = vmax.f32 %v2099, %v1914
    %v2101 = vmax.f32 %v2100, %v1918
    %v2102 = vmax.f32 %v2101, %v1922
    %v2103 = vmax.f32 %v2102, %v1926
    %v2104 = vmax.f32 %v2103, %v1930
    %v2105 = vmax.f32 %v2104, %v1934
    %v2106 = vmax.f32 %v2105, %v1938
    %v2107 = vmax.f32 %v2106, %v1942
    %v2108 = vmax.f32 %v2107, %v1946
    %v2109 = vmax.f32 %v2108, %v1950
    %v2110 = vmax.f32 %v2109, %v1954
    %v2111 = vrot.slane %v2110, 4
    %v2112 = vmax.f32 %v2110, %v2111
    %v2113 = vrot.slane %v2112, 2
    %v2114 = vmax.f32 %v2112, %v2113
    %v2115 = vrot.slane %v2114, 1
    %v2116 = vmax.f32 %v2114, %v2115
    %v2117 = vmax.f32 %v1895, %v1899
    %v2118 = vmax.f32 %v2117, %v1903
    %v2119 = vmax.f32 %v2118, %v1907
    %v2120 = vmax.f32 %v2119, %v1911
    %v2121 = vmax.f32 %v2120, %v1915
    %v2122 = vmax.f32 %v2121, %v1919
    %v2123 = vmax.f32 %v2122, %v1923
    %v2124 = vmax.f32 %v2123, %v1927
    %v2125 = vmax.f32 %v2124, %v1931
    %v2126 = vmax.f32 %v2125, %v1935
    %v2127 = vmax.f32 %v2126, %v1939
    %v2128 = vmax.f32 %v2127, %v1943
    %v2129 = vmax.f32 %v2128, %v1947
    %v2130 = vmax.f32 %v2129, %v1951
    %v2131 = vmax.f32 %v2130, %v1955
    %v2132 = vrot.slane %v2131, 4
    %v2133 = vmax.f32 %v2131, %v2132
    %v2134 = vrot.slane %v2133, 2
    %v2135 = vmax.f32 %v2133, %v2134
    %v2136 = vrot.slane %v2135, 1
    %v2137 = vmax.f32 %v2135, %v2136
    %v2138 = vmax.f32 %v1896, %v1900
    %v2139 = vmax.f32 %v2138, %v1904
    %v2140 = vmax.f32 %v2139, %v1908
    %v2141 = vmax.f32 %v2140, %v1912
    %v2142 = vmax.f32 %v2141, %v1916
    %v2143 = vmax.f32 %v2142, %v1920
    %v2144 = vmax.f32 %v2143, %v1924
    %v2145 = vmax.f32 %v2144, %v1928
    %v2146 = vmax.f32 %v2145, %v1932
    %v2147 = vmax.f32 %v2146, %v1936
    %v2148 = vmax.f32 %v2147, %v1940
    %v2149 = vmax.f32 %v2148, %v1944
    %v2150 = vmax.f32 %v2149, %v1948
    %v2151 = vmax.f32 %v2150, %v1952
    %v2152 = vmax.f32 %v2151, %v1956
    %v2153 = vrot.slane %v2152, 4
    %v2154 = vmax.f32 %v2152, %v2153
    %v2155 = vrot.slane %v2154, 2
    %v2156 = vmax.f32 %v2154, %v2155
    %v2157 = vrot.slane %v2156, 1
    %v2158 = vmax.f32 %v2156, %v2157
    %v2163 = vcombine.low %v2095, %v2116
    %v2164 = vcombine.low %v2137, %v2158
    %v2166 = vunpack.c.l.s4 1966171168
    %v2167 = vunpack.c.0.s8 %v2166
    %v2168 = vlaneseq
    %v2169 = vshrl.u32 %v2168, 7
    %v2170 = vsub.s32 %v2167, %v2169
    %v2171 = vrot.slane %v2163, %v2170
    %v2173 = vunpack.c.l.s4 1966171168
    %v2174 = vunpack.c.0.s8 %v2173
    %v2175 = vlaneseq
    %v2176 = vshrl.u32 %v2175, 7
    %v2177 = vsub.s32 %v2174, %v2176
    %v2178 = vrot.slane %v2164, %v2177
    %v2179 = vcombine.low %v2171, %v2178
    %v2181 = vunpack.c.l.s4 1966171168
    %v2182 = vunpack.c.0.s8 %v2181
    %v2183 = vlaneseq
    %v2184 = vshrl.u32 %v2183, 7
    %v2185 = vsub.s32 %v2182, %v2184
    %v2186 = vrot.slane %v2179, %v2185
    %s2188 = scalar_lea.vmem [#allocation5], 1
    %2189 = vst.msk [vmem:[%s2188] ss:$2 sm:$0xf] %vm2073, %v2186
    // Predicated region
    $region34: #{tpu_custom_call.1} parent=1 // pred_check
      _
    $region35: #{tpu_custom_call.1} parent=1 // pred_check_branch
      %2191 = sbr.rel (0) target = $region37
    $region36: #{tpu_custom_call.1} parent=1 // pred_region
      %s2193 = ssub.s32 128, 128
      %2194 = vsyncadd [#allocation4], %s2193
      %s2196 = sshll.u32 [#allocation5], 4
      %s2197 = int_to_ptr.vmem [resolvable:$true] %s2196
      %2199 = dma.vmem_to_hbm [thread:$0]  %s2197, 128, %s7, [#allocation4]
    $region37: #{tpu_custom_call.1} parent=1 // pred_fallthru
      _
    // Predicated region
    $region38: #{tpu_custom_call.1} parent=1 // pred_check
      _
    $region39: #{tpu_custom_call.1} parent=1 // pred_check_branch
      %2201 = sbr.rel (0) target = $region41
    $region40: #{tpu_custom_call.1} parent=1 // pred_region
      %2202 = dma.done [#allocation4], 128
    $region41: #{tpu_custom_call.1} parent=1 // pred_fallthru
      _
    %2203 = vsyncpa [#allocation3], 1
    %2204 = vsyncpa [#allocation4], 1

</llo_original>
